<compile_context>
chip_gen: v7x
topology: tpu7x:2x2x1
jax: 0.10.0
libtpu: 0.0.40
codegen_flags: <defaults>
</compile_context>

<pallas_src>
import functools

import jax
import jax.numpy as jnp
from jax import lax
from jax.experimental import pallas as pl
from jax.experimental.pallas import tpu as pltpu


def _mha_kernel(x_ref, wqkv_ref, wp_ref, bp_ref, o_ref, *, num_heads, mxu_dtype):
    # x_ref:    (Bb, T, C)    folded-batch activation block
    # wqkv_ref: (C, 3*H*D)    fused [Wq*(C**-0.5) | Wk | Wv], pre-transposed
    # wp_ref:   (H*D, C)      output projection (W_proj.T), lane-dense 2-D
    # bp_ref:   (1, C)        projection bias
    # o_ref:    (Bb, T, C)
    Bb, T, C = x_ref.shape
    HD = wp_ref.shape[0]
    H = num_heads
    D = HD // H
    att_dt = jnp.float32 if mxu_dtype is None else mxu_dtype

    # Fold batch into the matmul M dimension: (Bb,T,C)->(Bb*T,C) is a pure
    # leading-dim merge (row-major, sublane groups intact) -> zero relayout cost.
    x2 = x_ref[...].reshape(Bb * T, C)

    # One lane-dense MXU matmul produces Q/K/V for all heads and all folded rows.
    # 1/sqrt(C) is already folded into the Q columns of wqkv (host-side, free).
    qkv = jnp.dot(x2, wqkv_ref[...], preferred_element_type=jnp.float32)  # (Bb*T, 3HD)
    q3 = qkv[:, 0 * HD:1 * HD].astype(att_dt).reshape(Bb, T, HD)
    k3 = qkv[:, 1 * HD:2 * HD].astype(att_dt).reshape(Bb, T, HD)
    v3 = qkv[:, 2 * HD:3 * HD].astype(att_dt).reshape(Bb, T, HD)

    # Causal mask built once per grid step, shared across heads and folded batch.
    row = lax.broadcasted_iota(jnp.int32, (T, T), 0)
    col = lax.broadcasted_iota(jnp.int32, (T, T), 1)
    causal = (col <= row)[None]                      # (1, T, T), broadcast over Bb

    head_outs = []
    for h in range(H):                               # static unroll, H is small
        qh = q3[:, :, h * D:(h + 1) * D]             # (Bb, T, D)
        kh = k3[:, :, h * D:(h + 1) * D]
        vh = v3[:, :, h * D:(h + 1) * D]

        # Flash-attention contraction form: contract last dims; Mosaic stages K
        # for the MXU without an explicit per-head transpose op.
        s = jnp.einsum('btd,bsd->bts', qh, kh,
                       preferred_element_type=jnp.float32)             # (Bb, T, T)
        s = jnp.where(causal, s, -1e30)              # exp underflows to exactly 0
        s = s - jnp.max(s, axis=-1, keepdims=True)
        p = jnp.exp(s)
        # divide -> EUP approx reciprocal + VPU multiply (frees VALU slots)
        p = p * pl.reciprocal(jnp.sum(p, axis=-1, keepdims=True), approx=True)
        # attention dropout: identity (eval mode)

        head_outs.append(jnp.einsum('bts,bsd->btd', p.astype(att_dt), vh,
                                    preferred_element_type=jnp.float32))

    # Concatenate heads in registers (no VMEM scratch round-trip), then one fused
    # (Bb*T, HD) @ (HD, C) projection matmul for all folded rows.
    att = jnp.concatenate(head_outs, axis=-1).reshape(Bb * T, HD)
    y = jnp.dot(att.astype(wp_ref.dtype), wp_ref[...],
                preferred_element_type=jnp.float32) + bp_ref[...]
    # projection dropout: identity (eval mode); reference forward has NO residual.
    o_ref[...] = y.reshape(Bb, T, C).astype(o_ref.dtype)


def multi_head_attention(x, w_qkv, w_proj_t, b_proj, *, num_heads,
                         mxu_dtype=None, grid_steps=2):
    """
    x         : (B, T, C) float32
    w_qkv     : (C, 3*H*D) fused pre-transposed weights, with the 1/sqrt(C) score
                scale folded into the Q columns; qkv = x @ w_qkv.
                Column layout [ q_head0..q_headH-1 | k_head0.. | v_head0.. ].
    w_proj_t  : (H*D, C)  output projection, i.e. W_proj.T
    b_proj    : (C,)
    mxu_dtype : optional narrower MXU-operand dtype (jnp.bfloat16). Profitable on
                v5e, v6e AND v7x (all have bf16-native MXUs); accumulation and
                softmax stay f32.
    grid_steps: number of grid steps the batch is split over. Default 2 so v7x's
                two TensorCores both get work (dimension_semantics="parallel");
                on single-TC v5e/v6e the extra serial step is ~600 cycles.
    """
    B, T, C = x.shape
    HD = w_proj_t.shape[0]
    # Fold as many batch elements per step as possible while keeping `grid_steps`
    # steps: largest divisor of B that is <= grid_steps.
    steps = max(s for s in range(1, min(B, grid_steps) + 1) if B % s == 0)
    Bb = B // steps

    if mxu_dtype is not None:
        x = x.astype(mxu_dtype)
        w_qkv = w_qkv.astype(mxu_dtype)
        w_proj_t = w_proj_t.astype(mxu_dtype)
    b2 = b_proj.reshape(1, C).astype(jnp.float32)

    kernel = functools.partial(_mha_kernel, num_heads=num_heads, mxu_dtype=mxu_dtype)
    return pl.pallas_call(
        kernel,
        out_shape=jax.ShapeDtypeStruct((B, T, C), jnp.float32),
        grid_spec=pltpu.PrefetchScalarGridSpec(
            num_scalar_prefetch=0,
            grid=(steps,),
            in_specs=[
                pl.BlockSpec((Bb, T, C), lambda b: (b, 0, 0)),
                pl.BlockSpec((C, 3 * HD), lambda b: (0, 0)),
                pl.BlockSpec((HD, C), lambda b: (0, 0)),
                pl.BlockSpec((1, C), lambda b: (0, 0)),
            ],
            out_specs=pl.BlockSpec((Bb, T, C), lambda b: (b, 0, 0)),
        ),
        compiler_params=pltpu.CompilerParams(
            dimension_semantics=("parallel",)),
    )(x, w_qkv, w_proj_t, b2)


def _reference(x, wq, wk, wv, w_proj_head, b_proj):
    """Pure-JAX reference replicating the PyTorch forward (eval mode)."""
    B, T, C = x.shape
    q = jnp.einsum('btc,hcd->bhtd', x, wq)
    k = jnp.einsum('btc,hcd->bhtd', x, wk)
    v = jnp.einsum('btc,hcd->bhtd', x, wv)
    wei = jnp.einsum('bhtd,bhsd->bhts', q, k) * C ** (-0.5)
    mask = jnp.tril(jnp.ones((T, T), dtype=bool))
    wei = jnp.where(mask[None, None], wei, -jnp.inf)
    wei = jax.nn.softmax(wei, axis=-1)
    out = jnp.einsum('bhts,bhsd->bhtd', wei, v)
    y = jnp.einsum('bhtd,hdc->btc', out, w_proj_head) + b_proj
    return y


if __name__ == "__main__":
    # Small shapes consistent with the module; B=4 so batch folding (Bb=2) and the
    # 2-step parallel grid (v7x dual-TC) are both exercised.
    B, T = 4, 8
    n_embed = 32
    num_heads = 4
    head_size = n_embed // num_heads   # 8
    block_size = 16                    # tril buffer size (>= T)
    dropout = 0.1                      # identity in eval mode

    key = jax.random.PRNGKey(0)
    kx, kq, kk, kv, kp, kb = jax.random.split(key, 6)
    bound = 1.0 / (n_embed ** 0.5)

    x = jax.random.normal(kx, (B, T, n_embed), dtype=jnp.float32)
    # Per-head weights in "already transposed" form: q_h = x @ wq[h]  -> (H, C, D)
    wq = jax.random.uniform(kq, (num_heads, n_embed, head_size),
                            minval=-bound, maxval=bound, dtype=jnp.float32)
    wk = jax.random.uniform(kk, (num_heads, n_embed, head_size),
                            minval=-bound, maxval=bound, dtype=jnp.float32)
    wv = jax.random.uniform(kv, (num_heads, n_embed, head_size),
                            minval=-bound, maxval=bound, dtype=jnp.float32)
    # proj: Linear(n_embed, n_embed) with bias; W_proj.T split per head -> (H, D, C)
    w_proj_head = jax.random.uniform(kp, (num_heads, head_size, n_embed),
                                     minval=-bound, maxval=bound, dtype=jnp.float32)
    b_proj = jax.random.uniform(kb, (n_embed,),
                                minval=-bound, maxval=bound, dtype=jnp.float32)

    # Host-side weight packing (free layout plumbing): fused QKV (with 1/sqrt(C)
    # folded into the Q columns) + fused projection.
    C, H, D = n_embed, num_heads, head_size
    scale = C ** (-0.5)                # matches PyTorch: scaled by n_embed (C)
    w_qkv = jnp.concatenate(
        [wq.transpose(1, 0, 2).reshape(C, H * D) * scale,
         wk.transpose(1, 0, 2).reshape(C, H * D),
         wv.transpose(1, 0, 2).reshape(C, H * D)], axis=-1)          # (C, 3*H*D)
    w_proj_t = w_proj_head.reshape(H * D, C)                          # (H*D, C)

    ref = _reference(x, wq, wk, wv, w_proj_head, b_proj)

    # f32 operand path (reference-accurate; approx reciprocal only delta).
    out = multi_head_attention(x, w_qkv, w_proj_t, b_proj, num_heads=num_heads)
    out = jax.block_until_ready(out)
    assert out.shape == (B, T, n_embed)
    assert jnp.allclose(out, ref, atol=5e-3, rtol=5e-3), "f32 kernel mismatch vs reference"

    # bf16 MXU-operand path (recommended on v5e/v6e/v7x); f32 accumulation/softmax.
    out_bf16 = multi_head_attention(x, w_qkv, w_proj_t, b_proj,
                                    num_heads=num_heads, mxu_dtype=jnp.bfloat16)
    out_bf16 = jax.block_until_ready(out_bf16)
    assert jnp.allclose(out_bf16, ref, atol=5e-2, rtol=5e-2), "bf16 kernel mismatch vs reference"

    print("KERNEL_OK")
</pallas_src>

<mosaic_0001>
module attributes {stable_mosaic.version = 11 : i64} {
  func.func @_mha_kernel(%arg0: i32, %arg1: memref<2x8x32xf32, #tpu.memory_space<vmem>>, %arg2: memref<32x96xf32, #tpu.memory_space<vmem>>, %arg3: memref<32x32xf32, #tpu.memory_space<vmem>>, %arg4: memref<1x32xf32, #tpu.memory_space<vmem>>, %arg5: memref<2x8x32xf32, #tpu.memory_space<vmem>>) attributes {dimension_semantics = [#tpu.dimension_semantics<parallel>], iteration_bounds = array<i64: 2>, scalar_prefetch = 0 : i64, scratch_operands = 0 : i64, tpu.core_type = #tpu.core_type<tc>, window_params = [{transform_indices = @transform_0, window_bounds = array<i64: 2, 8, 32>}, {pipeline_mode = #tpu.pipeline_mode<synchronous>, transform_indices = @transform_1, window_bounds = array<i64: 32, 96>}, {pipeline_mode = #tpu.pipeline_mode<synchronous>, transform_indices = @transform_2, window_bounds = array<i64: 32, 32>}, {pipeline_mode = #tpu.pipeline_mode<synchronous>, transform_indices = @transform_3, window_bounds = array<i64: 1, 32>}, {transform_indices = @transform_4, window_bounds = array<i64: 2, 8, 32>}]} {
    %c0 = arith.constant 0 : index
    %c0_0 = arith.constant 0 : index
    %c0_1 = arith.constant 0 : index
    %0 = vector.load %arg1[%c0, %c0_0, %c0_1] : memref<2x8x32xf32, #tpu.memory_space<vmem>>, vector<2x8x32xf32>
    %1 = vector.shape_cast %0 : vector<2x8x32xf32> to vector<16x32xf32>
    %c0_2 = arith.constant 0 : index
    %c0_3 = arith.constant 0 : index
    %2 = vector.load %arg2[%c0_2, %c0_3] : memref<32x96xf32, #tpu.memory_space<vmem>>, vector<32x96xf32>
    %cst = arith.constant dense<0.000000e+00> : vector<16x96xf32>
    %3 = tpu.matmul %1, %2, %cst {dimension_numbers = #tpu.dot_dimension_numbers<[1], [0], [0], [1], [0, 0, 1, 1], [], []>} : vector<16x32xf32>, vector<32x96xf32>, vector<16x96xf32> -> vector<16x96xf32>
    %4 = vector.extract_strided_slice %3 {offsets = [0, 0], sizes = [16, 32], strides = [1, 1]} : vector<16x96xf32> to vector<16x32xf32>
    %5 = vector.shape_cast %4 : vector<16x32xf32> to vector<2x8x32xf32>
    %6 = vector.extract_strided_slice %3 {offsets = [0, 32], sizes = [16, 32], strides = [1, 1]} : vector<16x96xf32> to vector<16x32xf32>
    %7 = vector.shape_cast %6 : vector<16x32xf32> to vector<2x8x32xf32>
    %8 = vector.extract_strided_slice %3 {offsets = [0, 64], sizes = [16, 32], strides = [1, 1]} : vector<16x96xf32> to vector<16x32xf32>
    %9 = vector.shape_cast %8 : vector<16x32xf32> to vector<2x8x32xf32>
    %10 = tpu.iota {dimensions = array<i32: 0>} : vector<8x8xi32>
    %11 = tpu.iota {dimensions = array<i32: 1>} : vector<8x8xi32>
    %12 = arith.cmpi sle, %11, %10 : vector<8x8xi32>
    %13 = vector.shape_cast %12 : vector<8x8xi1> to vector<1x8x8xi1>
    %14 = vector.extract_strided_slice %5 {offsets = [0, 0, 0], sizes = [2, 8, 8], strides = [1, 1, 1]} : vector<2x8x32xf32> to vector<2x8x8xf32>
    %15 = vector.extract_strided_slice %7 {offsets = [0, 0, 0], sizes = [2, 8, 8], strides = [1, 1, 1]} : vector<2x8x32xf32> to vector<2x8x8xf32>
    %16 = vector.extract_strided_slice %9 {offsets = [0, 0, 0], sizes = [2, 8, 8], strides = [1, 1, 1]} : vector<2x8x32xf32> to vector<2x8x8xf32>
    "tpu.trace_start"() <{level = 10 : i32, message = "btd,bsd->bts"}> : () -> ()
    %cst_4 = arith.constant dense<0.000000e+00> : vector<2x8x8xf32>
    %17 = tpu.matmul %14, %15, %cst_4 {dimension_numbers = #tpu.dot_dimension_numbers<[2], [2], [1], [1], [0, 0, 0, 1, 1, 1], [0], [0]>} : vector<2x8x8xf32>, vector<2x8x8xf32>, vector<2x8x8xf32> -> vector<2x8x8xf32>
    %cst_5 = arith.constant -1.000000e+30 : f32
    "tpu.trace_stop"() : () -> ()
    %18 = vector.shape_cast %13 : vector<1x8x8xi1> to vector<1x8x8xi1>
    %19 = vector.broadcast %18 : vector<1x8x8xi1> to vector<2x8x8xi1>
    %20 = vector.broadcast %cst_5 : f32 to vector<2x8x8xf32>
    %21 = arith.select %19, %17, %20 : vector<2x8x8xi1>, vector<2x8x8xf32>
    %cst_6 = arith.constant dense<0xFF800000> : vector<2x8xf32>
    %22 = vector.multi_reduction <maximumf>, %21, %cst_6 [2] : vector<2x8x8xf32> to vector<2x8xf32>
    %23 = vector.shape_cast %22 : vector<2x8xf32> to vector<2x8x1xf32>
    %24 = vector.broadcast %23 : vector<2x8x1xf32> to vector<2x8x8xf32>
    %25 = arith.subf %21, %24 : vector<2x8x8xf32>
    %26 = math.exp %25 : vector<2x8x8xf32>
    %cst_7 = arith.constant dense<0.000000e+00> : vector<2x8xf32>
    %27 = vector.multi_reduction <add>, %26, %cst_7 [2] : vector<2x8x8xf32> to vector<2x8xf32>
    %28 = vector.shape_cast %27 : vector<2x8xf32> to vector<2x8x1xf32>
    %29 = tpu.reciprocal %28 {approx = true} : vector<2x8x1xf32> -> vector<2x8x1xf32>
    %30 = vector.broadcast %29 : vector<2x8x1xf32> to vector<2x8x8xf32>
    %31 = arith.mulf %26, %30 : vector<2x8x8xf32>
    "tpu.trace_start"() <{level = 10 : i32, message = "bts,bsd->btd"}> : () -> ()
    %cst_8 = arith.constant dense<0.000000e+00> : vector<2x8x8xf32>
    %32 = tpu.matmul %31, %16, %cst_8 {dimension_numbers = #tpu.dot_dimension_numbers<[2], [1], [1], [2], [0, 0, 0, 1, 1, 2], [0], [0]>} : vector<2x8x8xf32>, vector<2x8x8xf32>, vector<2x8x8xf32> -> vector<2x8x8xf32>
    "tpu.trace_stop"() : () -> ()
    %33 = vector.extract_strided_slice %5 {offsets = [0, 0, 8], sizes = [2, 8, 8], strides = [1, 1, 1]} : vector<2x8x32xf32> to vector<2x8x8xf32>
    %34 = vector.extract_strided_slice %7 {offsets = [0, 0, 8], sizes = [2, 8, 8], strides = [1, 1, 1]} : vector<2x8x32xf32> to vector<2x8x8xf32>
    %35 = vector.extract_strided_slice %9 {offsets = [0, 0, 8], sizes = [2, 8, 8], strides = [1, 1, 1]} : vector<2x8x32xf32> to vector<2x8x8xf32>
    "tpu.trace_start"() <{level = 10 : i32, message = "btd,bsd->bts"}> : () -> ()
    %cst_9 = arith.constant dense<0.000000e+00> : vector<2x8x8xf32>
    %36 = tpu.matmul %33, %34, %cst_9 {dimension_numbers = #tpu.dot_dimension_numbers<[2], [2], [1], [1], [0, 0, 0, 1, 1, 1], [0], [0]>} : vector<2x8x8xf32>, vector<2x8x8xf32>, vector<2x8x8xf32> -> vector<2x8x8xf32>
    %cst_10 = arith.constant -1.000000e+30 : f32
    "tpu.trace_stop"() : () -> ()
    %37 = vector.shape_cast %13 : vector<1x8x8xi1> to vector<1x8x8xi1>
    %38 = vector.broadcast %37 : vector<1x8x8xi1> to vector<2x8x8xi1>
    %39 = vector.broadcast %cst_10 : f32 to vector<2x8x8xf32>
    %40 = arith.select %38, %36, %39 : vector<2x8x8xi1>, vector<2x8x8xf32>
    %cst_11 = arith.constant dense<0xFF800000> : vector<2x8xf32>
    %41 = vector.multi_reduction <maximumf>, %40, %cst_11 [2] : vector<2x8x8xf32> to vector<2x8xf32>
    %42 = vector.shape_cast %41 : vector<2x8xf32> to vector<2x8x1xf32>
    %43 = vector.broadcast %42 : vector<2x8x1xf32> to vector<2x8x8xf32>
    %44 = arith.subf %40, %43 : vector<2x8x8xf32>
    %45 = math.exp %44 : vector<2x8x8xf32>
    %cst_12 = arith.constant dense<0.000000e+00> : vector<2x8xf32>
    %46 = vector.multi_reduction <add>, %45, %cst_12 [2] : vector<2x8x8xf32> to vector<2x8xf32>
    %47 = vector.shape_cast %46 : vector<2x8xf32> to vector<2x8x1xf32>
    %48 = tpu.reciprocal %47 {approx = true} : vector<2x8x1xf32> -> vector<2x8x1xf32>
    %49 = vector.broadcast %48 : vector<2x8x1xf32> to vector<2x8x8xf32>
    %50 = arith.mulf %45, %49 : vector<2x8x8xf32>
    "tpu.trace_start"() <{level = 10 : i32, message = "bts,bsd->btd"}> : () -> ()
    %cst_13 = arith.constant dense<0.000000e+00> : vector<2x8x8xf32>
    %51 = tpu.matmul %50, %35, %cst_13 {dimension_numbers = #tpu.dot_dimension_numbers<[2], [1], [1], [2], [0, 0, 0, 1, 1, 2], [0], [0]>} : vector<2x8x8xf32>, vector<2x8x8xf32>, vector<2x8x8xf32> -> vector<2x8x8xf32>
    "tpu.trace_stop"() : () -> ()
    %52 = vector.extract_strided_slice %5 {offsets = [0, 0, 16], sizes = [2, 8, 8], strides = [1, 1, 1]} : vector<2x8x32xf32> to vector<2x8x8xf32>
    %53 = vector.extract_strided_slice %7 {offsets = [0, 0, 16], sizes = [2, 8, 8], strides = [1, 1, 1]} : vector<2x8x32xf32> to vector<2x8x8xf32>
    %54 = vector.extract_strided_slice %9 {offsets = [0, 0, 16], sizes = [2, 8, 8], strides = [1, 1, 1]} : vector<2x8x32xf32> to vector<2x8x8xf32>
    "tpu.trace_start"() <{level = 10 : i32, message = "btd,bsd->bts"}> : () -> ()
    %cst_14 = arith.constant dense<0.000000e+00> : vector<2x8x8xf32>
    %55 = tpu.matmul %52, %53, %cst_14 {dimension_numbers = #tpu.dot_dimension_numbers<[2], [2], [1], [1], [0, 0, 0, 1, 1, 1], [0], [0]>} : vector<2x8x8xf32>, vector<2x8x8xf32>, vector<2x8x8xf32> -> vector<2x8x8xf32>
    %cst_15 = arith.constant -1.000000e+30 : f32
    "tpu.trace_stop"() : () -> ()
    %56 = vector.shape_cast %13 : vector<1x8x8xi1> to vector<1x8x8xi1>
    %57 = vector.broadcast %56 : vector<1x8x8xi1> to vector<2x8x8xi1>
    %58 = vector.broadcast %cst_15 : f32 to vector<2x8x8xf32>
    %59 = arith.select %57, %55, %58 : vector<2x8x8xi1>, vector<2x8x8xf32>
    %cst_16 = arith.constant dense<0xFF800000> : vector<2x8xf32>
    %60 = vector.multi_reduction <maximumf>, %59, %cst_16 [2] : vector<2x8x8xf32> to vector<2x8xf32>
    %61 = vector.shape_cast %60 : vector<2x8xf32> to vector<2x8x1xf32>
    %62 = vector.broadcast %61 : vector<2x8x1xf32> to vector<2x8x8xf32>
    %63 = arith.subf %59, %62 : vector<2x8x8xf32>
    %64 = math.exp %63 : vector<2x8x8xf32>
    %cst_17 = arith.constant dense<0.000000e+00> : vector<2x8xf32>
    %65 = vector.multi_reduction <add>, %64, %cst_17 [2] : vector<2x8x8xf32> to vector<2x8xf32>
    %66 = vector.shape_cast %65 : vector<2x8xf32> to vector<2x8x1xf32>
    %67 = tpu.reciprocal %66 {approx = true} : vector<2x8x1xf32> -> vector<2x8x1xf32>
    %68 = vector.broadcast %67 : vector<2x8x1xf32> to vector<2x8x8xf32>
    %69 = arith.mulf %64, %68 : vector<2x8x8xf32>
    "tpu.trace_start"() <{level = 10 : i32, message = "bts,bsd->btd"}> : () -> ()
    %cst_18 = arith.constant dense<0.000000e+00> : vector<2x8x8xf32>
    %70 = tpu.matmul %69, %54, %cst_18 {dimension_numbers = #tpu.dot_dimension_numbers<[2], [1], [1], [2], [0, 0, 0, 1, 1, 2], [0], [0]>} : vector<2x8x8xf32>, vector<2x8x8xf32>, vector<2x8x8xf32> -> vector<2x8x8xf32>
    "tpu.trace_stop"() : () -> ()
    %71 = vector.extract_strided_slice %5 {offsets = [0, 0, 24], sizes = [2, 8, 8], strides = [1, 1, 1]} : vector<2x8x32xf32> to vector<2x8x8xf32>
    %72 = vector.extract_strided_slice %7 {offsets = [0, 0, 24], sizes = [2, 8, 8], strides = [1, 1, 1]} : vector<2x8x32xf32> to vector<2x8x8xf32>
    %73 = vector.extract_strided_slice %9 {offsets = [0, 0, 24], sizes = [2, 8, 8], strides = [1, 1, 1]} : vector<2x8x32xf32> to vector<2x8x8xf32>
    "tpu.trace_start"() <{level = 10 : i32, message = "btd,bsd->bts"}> : () -> ()
    %cst_19 = arith.constant dense<0.000000e+00> : vector<2x8x8xf32>
    %74 = tpu.matmul %71, %72, %cst_19 {dimension_numbers = #tpu.dot_dimension_numbers<[2], [2], [1], [1], [0, 0, 0, 1, 1, 1], [0], [0]>} : vector<2x8x8xf32>, vector<2x8x8xf32>, vector<2x8x8xf32> -> vector<2x8x8xf32>
    %cst_20 = arith.constant -1.000000e+30 : f32
    "tpu.trace_stop"() : () -> ()
    %75 = vector.shape_cast %13 : vector<1x8x8xi1> to vector<1x8x8xi1>
    %76 = vector.broadcast %75 : vector<1x8x8xi1> to vector<2x8x8xi1>
    %77 = vector.broadcast %cst_20 : f32 to vector<2x8x8xf32>
    %78 = arith.select %76, %74, %77 : vector<2x8x8xi1>, vector<2x8x8xf32>
    %cst_21 = arith.constant dense<0xFF800000> : vector<2x8xf32>
    %79 = vector.multi_reduction <maximumf>, %78, %cst_21 [2] : vector<2x8x8xf32> to vector<2x8xf32>
    %80 = vector.shape_cast %79 : vector<2x8xf32> to vector<2x8x1xf32>
    %81 = vector.broadcast %80 : vector<2x8x1xf32> to vector<2x8x8xf32>
    %82 = arith.subf %78, %81 : vector<2x8x8xf32>
    %83 = math.exp %82 : vector<2x8x8xf32>
    %cst_22 = arith.constant dense<0.000000e+00> : vector<2x8xf32>
    %84 = vector.multi_reduction <add>, %83, %cst_22 [2] : vector<2x8x8xf32> to vector<2x8xf32>
    %85 = vector.shape_cast %84 : vector<2x8xf32> to vector<2x8x1xf32>
    %86 = tpu.reciprocal %85 {approx = true} : vector<2x8x1xf32> -> vector<2x8x1xf32>
    %87 = vector.broadcast %86 : vector<2x8x1xf32> to vector<2x8x8xf32>
    %88 = arith.mulf %83, %87 : vector<2x8x8xf32>
    "tpu.trace_start"() <{level = 10 : i32, message = "bts,bsd->btd"}> : () -> ()
    %cst_23 = arith.constant dense<0.000000e+00> : vector<2x8x8xf32>
    %89 = tpu.matmul %88, %73, %cst_23 {dimension_numbers = #tpu.dot_dimension_numbers<[2], [1], [1], [2], [0, 0, 0, 1, 1, 2], [0], [0]>} : vector<2x8x8xf32>, vector<2x8x8xf32>, vector<2x8x8xf32> -> vector<2x8x8xf32>
    "tpu.trace_stop"() : () -> ()
    %90 = tpu.concatenate %32, %51, %70, %89 in 2 : vector<2x8x8xf32>, vector<2x8x8xf32>, vector<2x8x8xf32>, vector<2x8x8xf32> -> vector<2x8x32xf32>
    %91 = vector.shape_cast %90 : vector<2x8x32xf32> to vector<16x32xf32>
    %c0_24 = arith.constant 0 : index
    %c0_25 = arith.constant 0 : index
    %92 = vector.load %arg3[%c0_24, %c0_25] : memref<32x32xf32, #tpu.memory_space<vmem>>, vector<32x32xf32>
    %cst_26 = arith.constant dense<0.000000e+00> : vector<16x32xf32>
    %93 = tpu.matmul %91, %92, %cst_26 {dimension_numbers = #tpu.dot_dimension_numbers<[1], [0], [0], [1], [0, 0, 1, 1], [], []>} : vector<16x32xf32>, vector<32x32xf32>, vector<16x32xf32> -> vector<16x32xf32>
    %c0_27 = arith.constant 0 : index
    %c0_28 = arith.constant 0 : index
    %94 = vector.load %arg4[%c0_27, %c0_28] : memref<1x32xf32, #tpu.memory_space<vmem>>, vector<1x32xf32>
    %95 = vector.broadcast %94 : vector<1x32xf32> to vector<16x32xf32>
    %96 = arith.addf %93, %95 : vector<16x32xf32>
    %97 = vector.shape_cast %96 : vector<16x32xf32> to vector<2x8x32xf32>
    %c0_29 = arith.constant 0 : index
    %c0_30 = arith.constant 0 : index
    %c0_31 = arith.constant 0 : index
    %98 = vector.load %arg5[%c0_29, %c0_30, %c0_31] : memref<2x8x32xf32, #tpu.memory_space<vmem>>, vector<2x8x32xf32>
    tpu.vector_store %arg5[%c0_29, %c0_30, %c0_31], %97 {strides = array<i32>} : memref<2x8x32xf32, #tpu.memory_space<vmem>>, vector<2x8x32xf32>,
    return
  }
  func.func @transform_0(%arg0: i32) -> (i32, i32, i32) {
    %c0_i32 = arith.constant 0 : i32
    %c0_i32_0 = arith.constant 0 : i32
    %c0_i32_1 = arith.constant 0 : i32
    return %arg0, %c0_i32, %c0_i32_0 : i32, i32, i32
  }
  func.func @transform_1(%arg0: i32) -> (i32, i32) {
    %c0_i32 = arith.constant 0 : i32
    %c0_i32_0 = arith.constant 0 : i32
    %c0_i32_1 = arith.constant 0 : i32
    return %c0_i32, %c0_i32_0 : i32, i32
  }
  func.func @transform_2(%arg0: i32) -> (i32, i32) {
    %c0_i32 = arith.constant 0 : i32
    %c0_i32_0 = arith.constant 0 : i32
    %c0_i32_1 = arith.constant 0 : i32
    return %c0_i32, %c0_i32_0 : i32, i32
  }
  func.func @transform_3(%arg0: i32) -> (i32, i32) {
    %c0_i32 = arith.constant 0 : i32
    %c0_i32_0 = arith.constant 0 : i32
    %c0_i32_1 = arith.constant 0 : i32
    return %c0_i32, %c0_i32_0 : i32, i32
  }
  func.func @transform_4(%arg0: i32) -> (i32, i32, i32) {
    %c0_i32 = arith.constant 0 : i32
    %c0_i32_0 = arith.constant 0 : i32
    %c0_i32_1 = arith.constant 0 : i32
    return %arg0, %c0_i32, %c0_i32_0 : i32, i32, i32
  }
}

</mosaic_0001>

<llo_original>
// kernel: tpu_custom_call.1
$region0: #{tpu_custom_call.1}
  #allocation0 [shape = 'u32[]', space=smem, size = 0x4, offset = 0x4, fixed_abs, tag = 'smem constant byte address 0x4 - core index']
  #allocation1 [shape = 'u32[144,128]{1,0:T(1,128)}', space=vmem, size = 0x12000, scoped, tag = 'internal scratch']
  %s0 = inlined_call_operand.hbm [shape: f32[4,8,32], index: 0, kind: input, shape index: {}]
  %s1 = inlined_call_operand.hbm [shape: f32[32,96], index: 1, kind: input, shape index: {}]
  %s2 = inlined_call_operand.hbm [shape: f32[32,32], index: 2, kind: input, shape index: {}]
  %s3 = inlined_call_operand.vmem [shape: f32[1,32], index: 3, kind: input, shape index: {}]
  %s4 = inlined_call_operand.hbm [shape: f32[4,8,32], index: 4, kind: output, shape index: {}]
  %s5 = sld [smem:[#allocation0]]
  $region61: #{tpu_custom_call.1} parent=0
    _
  %s7 = ssub.s32 1, %s5
  %s8 = scalar_select 0, %s7, %s5
  $region1: #{tpu_custom_call.1} parent=0
    #allocation2 [shape = 'u8[16384]{0}', space=vmem, size = 0x4000, scoped, tag = 'input window, operand 0']
    #allocation3 [shape = 's32[2]{0}', space=sflag, size = 0x8, scoped, tag = 'scoped memory for tpu_custom_call.1']
    #allocation4 [shape = 's32[2]{0}', space=sflag, size = 0x8, scoped, tag = 'scoped memory for tpu_custom_call.1']
    #allocation5 [shape = 'u8[16384]{0}', space=vmem, size = 0x4000, scoped, tag = 'input window, operand 1, single buffered']
    #allocation6 [shape = 's32[1]{0}', space=sflag, size = 0x4, scoped, tag = 'scoped memory for tpu_custom_call.1']
    #allocation7 [shape = 'u8[16384]{0}', space=vmem, size = 0x4000, scoped, tag = 'input window, operand 2, single buffered']
    #allocation8 [shape = 'u8[16384]{0}', space=vmem, size = 0x4000, scoped, tag = 'output window, operand 0']
    %9 = vsyncpa [#allocation3], 0
    %s10 = scalar_lea.sflag [#allocation3], 1
    %11 = vsyncpa %s10, 0
    %12 = vsyncpa [#allocation6], 0
    %13 = vsyncpa [#allocation4], 0
    %s14 = scalar_lea.sflag [#allocation4], 1
    %15 = vsyncpa %s14, 0
    loop: start=0, step=1, limit=4
    $region2: #{tpu_custom_call.1} parent=1 // loop_pre_header
      _
    $region3: #{tpu_custom_call.1} parent=1 // loop_header
      %s17 = sphi 0, %s21
      %p18 = scmp.ge.s32.totalorder %s17, 4
      %s27 = sphi 0, %s29
      %s30 = sphi 0, %s27
      %s31 = sphi 0, %s30
      %s47 = sphi 0, %s31
      %s51 = sphi 0, %s51
      %s53 = sphi 0, %s51
      %s54 = sphi 0, %s53
      %s68 = sphi 0, %s54
      %s72 = sphi 0, %s72
      %s74 = sphi 0, %s72
      %s75 = sphi 0, %s74
      %s89 = sphi 0, %s75
      %s93 = sphi 0, %s93
      %s95 = sphi 0, %s93
      %s96 = sphi 0, %s95
      %s110 = sphi 0, %s96
      %s116 = sphi 0, %s118
      %s119 = sphi 0, %s116
      %s120 = sphi 0, %s119
      %s136 = sphi 0, %s120
    $region4: #{tpu_custom_call.1} parent=1 // loop_header_branch
      %20 = sbr.rel (%p18) target = $region8
    $region5: #{tpu_custom_call.1} parent=1 // loop_body
      %s22 = ssub.s32 %s17, 1
      %s23 = ssub.s32 %s17, 2
      %s24 = sadd.s32 %s17, 1
      %s25 = ssub.s32 %s17, %s24
      %p26 = scmp.eq.s32.totalorder %s25, 0
      %s28 = sadd.s32 %s27, 1
      %s29 = scalar_select %p26, %s27, %s28
      %p32 = pneg %p26
      %p33 = scmp.eq.s32.totalorder %s17, 1
      %p34 = por %p32, %p33
      %p35 = scmp.ne.s32.totalorder %s27, %s30
      %p36 = scmp.eq.s32.totalorder %s17, 0
      %p37 = por %p35, %p36
      %p38 = scmp.ne.s32.totalorder %s27, %s30
      %p39 = scmp.eq.s32.totalorder %s22, 1
      %p40 = por %p38, %p39
      %p41 = scmp.ne.s32.totalorder %s30, %s31
      %p42 = scmp.eq.s32.totalorder %s22, 0
      %p43 = por %p41, %p42
      %p44 = scmp.ne.s32.totalorder %s30, %s31
      %p45 = scmp.eq.s32.totalorder %s23, 1
      %p46 = por %p44, %p45
      %p48 = scmp.ne.s32.totalorder %s31, %s47
      %p49 = scmp.eq.s32.totalorder %s23, 0
      %p50 = por %p48, %p49
      %s52 = sadd.s32 %s51, 1
      %p55 = scmp.eq.s32.totalorder %s17, 1
      %p56 = scmp.ne.s32.totalorder %s51, %s53
      %p57 = scmp.eq.s32.totalorder %s17, 0
      %p58 = por %p56, %p57
      %p59 = scmp.ne.s32.totalorder %s51, %s53
      %p60 = scmp.eq.s32.totalorder %s22, 1
      %p61 = por %p59, %p60
      %p62 = scmp.ne.s32.totalorder %s53, %s54
      %p63 = scmp.eq.s32.totalorder %s22, 0
      %p64 = por %p62, %p63
      %p65 = scmp.ne.s32.totalorder %s53, %s54
      %p66 = scmp.eq.s32.totalorder %s23, 1
      %p67 = por %p65, %p66
      %p69 = scmp.ne.s32.totalorder %s54, %s68
      %p70 = scmp.eq.s32.totalorder %s23, 0
      %p71 = por %p69, %p70
      %s73 = sadd.s32 %s72, 1
      %p76 = scmp.eq.s32.totalorder %s17, 1
      %p77 = scmp.ne.s32.totalorder %s72, %s74
      %p78 = scmp.eq.s32.totalorder %s17, 0
      %p79 = por %p77, %p78
      %p80 = scmp.ne.s32.totalorder %s72, %s74
      %p81 = scmp.eq.s32.totalorder %s22, 1
      %p82 = por %p80, %p81
      %p83 = scmp.ne.s32.totalorder %s74, %s75
      %p84 = scmp.eq.s32.totalorder %s22, 0
      %p85 = por %p83, %p84
      %p86 = scmp.ne.s32.totalorder %s74, %s75
      %p87 = scmp.eq.s32.totalorder %s23, 1
      %p88 = por %p86, %p87
      %p90 = scmp.ne.s32.totalorder %s75, %s89
      %p91 = scmp.eq.s32.totalorder %s23, 0
      %p92 = por %p90, %p91
      %s94 = sadd.s32 %s93, 1
      %p97 = scmp.eq.s32.totalorder %s17, 1
      %p98 = scmp.ne.s32.totalorder %s93, %s95
      %p99 = scmp.eq.s32.totalorder %s17, 0
      %p100 = por %p98, %p99
      %p101 = scmp.ne.s32.totalorder %s93, %s95
      %p102 = scmp.eq.s32.totalorder %s22, 1
      %p103 = por %p101, %p102
      %p104 = scmp.ne.s32.totalorder %s95, %s96
      %p105 = scmp.eq.s32.totalorder %s22, 0
      %p106 = por %p104, %p105
      %p107 = scmp.ne.s32.totalorder %s95, %s96
      %p108 = scmp.eq.s32.totalorder %s23, 1
      %p109 = por %p107, %p108
      %p111 = scmp.ne.s32.totalorder %s96, %s110
      %p112 = scmp.eq.s32.totalorder %s23, 0
      %p113 = por %p111, %p112
      %s114 = ssub.s32 %s17, %s24
      %p115 = scmp.eq.s32.totalorder %s114, 0
      %s117 = sadd.s32 %s116, 1
      %s118 = scalar_select %p115, %s116, %s117
      %p121 = pneg %p115
      %p122 = scmp.eq.s32.totalorder %s17, 1
      %p123 = por %p121, %p122
      %p124 = scmp.ne.s32.totalorder %s116, %s119
      %p125 = scmp.eq.s32.totalorder %s17, 0
      %p126 = por %p124, %p125
      %p127 = scmp.ne.s32.totalorder %s116, %s119
      %p128 = scmp.eq.s32.totalorder %s22, 1
      %p129 = por %p127, %p128
      %p130 = scmp.ne.s32.totalorder %s119, %s120
      %p131 = scmp.eq.s32.totalorder %s22, 0
      %p132 = por %p130, %p131
      %p133 = scmp.ne.s32.totalorder %s119, %s120
      %p134 = scmp.eq.s32.totalorder %s23, 1
      %p135 = por %p133, %p134
      %p137 = scmp.ne.s32.totalorder %s120, %s136
      %p138 = scmp.eq.s32.totalorder %s23, 0
      %p139 = por %p137, %p138
      %p140 = scmp.le.s32.totalorder 1, %s17
      %p141 = scmp.lt.s32.totalorder %s17, 3
      %p142 = pnand %p140, %p141
      %p143 = pneg %p142
      // Predicated region
      $region9: #{tpu_custom_call.1} parent=5 // pred_check
        _
      $region10: #{tpu_custom_call.1} parent=5 // pred_check_branch
        %145 = sbr.rel (%p142) target = $region12
      $region11: #{tpu_custom_call.1} parent=5 // pred_region
        %s146 = ssub.s32 %s17, 1
        // Predicated region
        $region13: #{tpu_custom_call.1} parent=11 // pred_check
          %p147 = pneg %p64
        $region14: #{tpu_custom_call.1} parent=11 // pred_check_branch
          %149 = sbr.rel (%p147) target = $region16
        $region15: #{tpu_custom_call.1} parent=11 // pred_region
          %s151 = ssub.s32 512, 512
          %152 = vsyncadd [#allocation6], %s151
          %s153 = sshll.u32 [#allocation5], 4
          %s154 = int_to_ptr.vmem [resolvable:$true] %s153
          %159 = dma.hbm_to_vmem [thread:$0]  %s1, 512, %s154, [#allocation6], 128, 128, 8
        $region16: #{tpu_custom_call.1} parent=11 // pred_fallthru
          _
        // Predicated region
        $region17: #{tpu_custom_call.1} parent=11 // pred_check
          %p160 = pneg %p85
        $region18: #{tpu_custom_call.1} parent=11 // pred_check_branch
          %162 = sbr.rel (%p160) target = $region20
        $region19: #{tpu_custom_call.1} parent=11 // pred_region
          %s164 = ssub.s32 512, 512
          %165 = vsyncadd [#allocation6], %s164
          %s166 = sshll.u32 [#allocation7], 4
          %s167 = int_to_ptr.vmem [resolvable:$true] %s166
          %172 = dma.hbm_to_vmem [thread:$0]  %s2, 512, %s167, [#allocation6], 128, 128, 8
        $region20: #{tpu_custom_call.1} parent=11 // pred_fallthru
          _
        // Predicated region
        $region21: #{tpu_custom_call.1} parent=11 // pred_check
          %p173 = pneg %p106
        $region22: #{tpu_custom_call.1} parent=11 // pred_check_branch
          %175 = sbr.rel (%p173) target = $region24
        $region23: #{tpu_custom_call.1} parent=11 // pred_region
          _
        $region24: #{tpu_custom_call.1} parent=11 // pred_fallthru
          _
      $region12: #{tpu_custom_call.1} parent=5 // pred_fallthru
        _
      %p176 = scmp.lt.s32.totalorder %s17, 2
      // Predicated region
      $region25: #{tpu_custom_call.1} parent=5 // pred_check
        %p177 = pneg %p176
      $region26: #{tpu_custom_call.1} parent=5 // pred_check_branch
        %179 = sbr.rel (%p177) target = $region28
      $region27: #{tpu_custom_call.1} parent=5 // pred_region
        // Predicated region
        $region29: #{tpu_custom_call.1} parent=27 // pred_check
          %p180 = pneg %p37
        $region30: #{tpu_custom_call.1} parent=27 // pred_check_branch
          %182 = sbr.rel (%p180) target = $region32
        $region31: #{tpu_custom_call.1} parent=27 // pred_region
          %s183 = sand.u32 %s27, 1
          %s184 = scalar_lea.sflag [#allocation3], %s183
          %s185 = sand.u32 %s27, 1
          %s186 = smul.addr %s185, 16
          %s187 = scalar_lea.vmem [#allocation2], %s186
          %s188 = smul.u32 2, %s17
          %s190 = ssub.s32 256, 256
          %191 = vsyncadd %s184, %s190
          %s192 = smul.addr %s188, 128
          %s193 = scalar_lea.hbm %s0, %s192
          %s194 = sshll.u32 %s187, 4
          %s195 = int_to_ptr.vmem [resolvable:$true] %s194
          %200 = dma.hbm_to_vmem [thread:$0]  %s193, 256, %s195, %s184, 128, 128, 8
        $region32: #{tpu_custom_call.1} parent=27 // pred_fallthru
          _
      $region28: #{tpu_custom_call.1} parent=5 // pred_fallthru
        _
      %p201 = scmp.le.s32.totalorder 1, %s17
      %p202 = scmp.lt.s32.totalorder %s17, 3
      %p203 = pnand %p201, %p202
      %p204 = pneg %p203
      // Predicated region
      $region33: #{tpu_custom_call.1} parent=5 // pred_check
        _
      $region34: #{tpu_custom_call.1} parent=5 // pred_check_branch
        %206 = sbr.rel (%p203) target = $region36
      $region35: #{tpu_custom_call.1} parent=5 // pred_region
        %s207 = ssub.s32 %s17, 1
        %s208 = sand.u32 %s30, 1
        %s209 = scalar_lea.sflag [#allocation3], %s208
        %s210 = sand.u32 %s30, 1
        %s211 = smul.addr %s210, 16
        %s212 = scalar_lea.vmem [#allocation2], %s211
        // Predicated region
        $region37: #{tpu_custom_call.1} parent=35 // pred_check
          %p213 = pneg %p43
        $region38: #{tpu_custom_call.1} parent=35 // pred_check_branch
          %215 = sbr.rel (%p213) target = $region40
        $region39: #{tpu_custom_call.1} parent=35 // pred_region
          %216 = dma.done %s209, 256
        $region40: #{tpu_custom_call.1} parent=35 // pred_fallthru
          _
        // Predicated region
        $region41: #{tpu_custom_call.1} parent=35 // pred_check
          %p217 = pneg %p64
        $region42: #{tpu_custom_call.1} parent=35 // pred_check_branch
          %219 = sbr.rel (%p217) target = $region44
        $region43: #{tpu_custom_call.1} parent=35 // pred_region
          %220 = dma.done [#allocation6], 512
        $region44: #{tpu_custom_call.1} parent=35 // pred_fallthru
          _
        // Predicated region
        $region45: #{tpu_custom_call.1} parent=35 // pred_check
          %p221 = pneg %p85
        $region46: #{tpu_custom_call.1} parent=35 // pred_check_branch
          %223 = sbr.rel (%p221) target = $region48
        $region47: #{tpu_custom_call.1} parent=35 // pred_region
          %224 = dma.done [#allocation6], 512
        $region48: #{tpu_custom_call.1} parent=35 // pred_fallthru
          _
        %s225 = sand.u32 %s30, 1
        %s226 = scalar_lea.sflag [#allocation3], %s225
        %s227 = sand.u32 %s30, 1
        %s228 = smul.addr %s227, 16
        %s229 = scalar_lea.vmem [#allocation2], %s228
        %p230 = pneg %p43
        %p231 = pneg %p40
        %p232 = pneg %p64
        %p233 = pneg %p61
        %p234 = pneg %p85
        %p235 = pneg %p82
        %p236 = pneg %p106
        %p237 = pneg %p103
        %p238 = pneg %p132
        %p239 = pneg %p129
        %s240 = sand.u32 %s119, 1
        %s241 = scalar_lea.sflag [#allocation4], %s240
        %s242 = sand.u32 %s119, 1
        %s243 = smul.addr %s242, 16
        %s244 = scalar_lea.vmem [#allocation8], %s243
        %s245 = smul.u32 2, %s22
        %s246 = smul.u32 2, %s22
        %v247 = vld [vmem:[%s212] sm:$0xff]
        %v248 = vld [vmem:[%s212 + $0x8] sm:$0xff]
        %v249 = vld [vmem:[#allocation5] sm:$0xff]
        %v250 = vld [vmem:[#allocation5 + $0x8] sm:$0xff]
        %v251 = vld [vmem:[#allocation5 + $0x10] sm:$0xff]
        %v252 = vld [vmem:[#allocation5 + $0x18] sm:$0xff]
        %vm253 = vcmask 261120
        %v255 = vsel %vm253, %v247, 0
        %v258 = vsel %vm253, %v248, 0
        %260 = vmatprep.subr.mxu0 0.0
        %261 = vmatpush1.msra.mxu0 %v249
        %262 = vmatprep.subr.mxu0 0.0
        %263 = vmatpush1.msra.mxu0 %v250
        %264 = vmatprep.subr.mxu0 0.0
        %265 = vmatpush1.msra.mxu0 %v251
        %266 = vmatprep.subr.mxu0 0.0
        %267 = vmatpush1.msra.mxu0 %v252
        %268 = vmatprep.subr.mxu0 0.0
        %269 = vmatpush1.msra.mxu0 0.0
        %270 = vmatprep.subr.mxu0 0.0
        %271 = vmatpush1.msra.mxu0 0.0
        %272 = vmatprep.subr.mxu0 0.0
        %273 = vmatpush1.msra.mxu0 0.0
        %274 = vmatprep.subr.mxu0 0.0
        %275 = vmatpush1.msra.mxu0 0.0
        %276 = vmatprep.subr.mxu0 0.0
        %277 = vmatpush1.msra.mxu0 0.0
        %278 = vmatprep.subr.mxu0 0.0
        %279 = vmatpush1.msra.mxu0 0.0
        %280 = vmatprep.subr.mxu0 0.0
        %281 = vmatpush1.msra.mxu0 0.0
        %282 = vmatprep.subr.mxu0 0.0
        %283 = vmatpush1.msra.mxu0 0.0
        %284 = vmatprep.subr.mxu0 0.0
        %285 = vmatpush1.msra.mxu0 0.0
        %286 = vmatprep.subr.mxu0 0.0
        %287 = vmatpush1.msra.mxu0 0.0
        %288 = vmatprep.subr.mxu0 0.0
        %289 = vmatpush1.msra.mxu0 0.0
        %290 = vmatprep.subr.mxu0 0.0
        %291 = vmatpush1.msra.mxu0 0.0
        %292 = vmatprep.subr.mxu0 0.0
        %293 = vmatpush1.msra.mxu0 0.0
        %294 = vmatprep.subr.mxu0 0.0
        %295 = vmatpush1.msra.mxu0 0.0
        %296 = vmatprep.subr.mxu0 0.0
        %297 = vmatpush1.msra.mxu0 0.0
        %298 = vmatprep.subr.mxu0 0.0
        %299 = vmatpush1.msra.mxu0 0.0
        %300 = vmatprep.subr.mxu0 0.0
        %301 = vmatpush1.msra.mxu0 0.0
        %302 = vmatprep.subr.mxu0 0.0
        %303 = vmatpush1.msra.mxu0 0.0
        %304 = vmatprep.subr.mxu0 0.0
        %305 = vmatpush1.msra.mxu0 0.0
        %306 = vmatprep.subr.mxu0 0.0
        %307 = vmatpush1.msra.mxu0 0.0
        %308 = vmatprep.subr.mxu0 0.0
        %309 = vmatpush1.msra.mxu0 0.0
        %310 = vmatprep.subr.mxu0 0.0
        %311 = vmatpush1.msra.mxu0 0.0
        %312 = vmatprep.subr.mxu0 0.0
        %313 = vmatpush1.msra.mxu0 0.0
        %314 = vmatprep.subr.mxu0 0.0
        %315 = vmatpush1.msra.mxu0 0.0
        %316 = vmatprep.subr.mxu0 0.0
        %317 = vmatpush1.msra.mxu0 0.0
        %318 = vmatprep.subr.mxu0 0.0
        %319 = vmatpush1.msra.mxu0 0.0
        %320 = vmatprep.subr.mxu0 0.0
        %321 = vmatpush1.msra.mxu0 0.0
        %322 = vmatprep.subr.mxu0 0.0
        %323 = vmatpush1.msra.mxu0 0.0
        %324 = vmatprep.mubr.f32.mxu0 0.0
        %325 = vmatmul.mubr.f32.gmra.mrb[0].mxu0 %v255
        %v326 = vpop.f32.mrb[0].mxu0
        %v327 = vadd.f32 0.0, %v326
        %v328 = vpop.f32.mrb[0].mxu0
        %329 = vmatprep.mubr.f32.mxu0 0.0
        %330 = vmatmul.mubr.f32.gmra.mrb[0].mxu0 %v258
        %v331 = vpop.f32.mrb[0].mxu0
        %v332 = vadd.f32 0.0, %v331
        %v333 = vpop.f32.mrb[0].mxu0
        %334 = vdwg.mxu0
        %v335 = vlaneseq
        %v336 = vshrl.u32 %v335, 7
        %v337 = vlaneseq
        %v338 = vand.u32 %v337, 127
        %vm339 = vcmp.le.s32.totalorder %v338, %v336
        %341 = vrot.lane.b32.xlu0 %v327, 96
        %v342 = vpop.permute.xlu0 %341
        %vm343 = vcmask 64512
        %v344 = vsel %vm343, %v327, 0
        %v346 = vsel %vm343, %v342, 0
        %348 = vmatprep.subr.mxu0 0.0
        %349 = vmatpush1.xpose.msra.mxu0 %v346
        %350 = vmatprep.subr.mxu0 0.0
        %351 = vmatpush1.xpose.msra.mxu0 0.0
        %352 = vmatprep.subr.mxu0 0.0
        %353 = vmatpush1.xpose.msra.mxu0 0.0
        %354 = vmatprep.subr.mxu0 0.0
        %355 = vmatpush1.xpose.msra.mxu0 0.0
        %356 = vmatprep.subr.mxu0 0.0
        %357 = vmatpush1.xpose.msra.mxu0 0.0
        %358 = vmatprep.subr.mxu0 0.0
        %359 = vmatpush1.xpose.msra.mxu0 0.0
        %360 = vmatprep.subr.mxu0 0.0
        %361 = vmatpush1.xpose.msra.mxu0 0.0
        %362 = vmatprep.subr.mxu0 0.0
        %363 = vmatpush1.xpose.msra.mxu0 0.0
        %364 = vmatprep.subr.mxu0 0.0
        %365 = vmatpush1.xpose.msra.mxu0 0.0
        %366 = vmatprep.subr.mxu0 0.0
        %367 = vmatpush1.xpose.msra.mxu0 0.0
        %368 = vmatprep.subr.mxu0 0.0
        %369 = vmatpush1.xpose.msra.mxu0 0.0
        %370 = vmatprep.subr.mxu0 0.0
        %371 = vmatpush1.xpose.msra.mxu0 0.0
        %372 = vmatprep.subr.mxu0 0.0
        %373 = vmatpush1.xpose.msra.mxu0 0.0
        %374 = vmatprep.subr.mxu0 0.0
        %375 = vmatpush1.xpose.msra.mxu0 0.0
        %376 = vmatprep.subr.mxu0 0.0
        %377 = vmatpush1.xpose.msra.mxu0 0.0
        %378 = vmatprep.subr.mxu0 0.0
        %379 = vmatpush1.xpose.msra.mxu0 0.0
        %380 = vmatprep.subr.mxu0 0.0
        %381 = vmatpush1.xpose.msra.mxu0 0.0
        %382 = vmatprep.subr.mxu0 0.0
        %383 = vmatpush1.xpose.msra.mxu0 0.0
        %384 = vmatprep.subr.mxu0 0.0
        %385 = vmatpush1.xpose.msra.mxu0 0.0
        %386 = vmatprep.subr.mxu0 0.0
        %387 = vmatpush1.xpose.msra.mxu0 0.0
        %388 = vmatprep.subr.mxu0 0.0
        %389 = vmatpush1.xpose.msra.mxu0 0.0
        %390 = vmatprep.subr.mxu0 0.0
        %391 = vmatpush1.xpose.msra.mxu0 0.0
        %392 = vmatprep.subr.mxu0 0.0
        %393 = vmatpush1.xpose.msra.mxu0 0.0
        %394 = vmatprep.subr.mxu0 0.0
        %395 = vmatpush1.xpose.msra.mxu0 0.0
        %396 = vmatprep.subr.mxu0 0.0
        %397 = vmatpush1.xpose.msra.mxu0 0.0
        %398 = vmatprep.subr.mxu0 0.0
        %399 = vmatpush1.xpose.msra.mxu0 0.0
        %400 = vmatprep.subr.mxu0 0.0
        %401 = vmatpush1.xpose.msra.mxu0 0.0
        %402 = vmatprep.subr.mxu0 0.0
        %403 = vmatpush1.xpose.msra.mxu0 0.0
        %404 = vmatprep.subr.mxu0 0.0
        %405 = vmatpush1.xpose.msra.mxu0 0.0
        %406 = vmatprep.subr.mxu0 0.0
        %407 = vmatpush1.xpose.msra.mxu0 0.0
        %408 = vmatprep.subr.mxu0 0.0
        %409 = vmatpush1.xpose.msra.mxu0 0.0
        %410 = vmatprep.subr.mxu0 0.0
        %411 = vmatpush1.xpose.msra.mxu0 0.0
        %412 = vmatprep.mubr.f32.mxu0 0.0
        %413 = vmatmul.mubr.f32.gmra.mrb[0].mxu0 %v344
        %v414 = vpop.f32.mrb[0].mxu0
        %v415 = vadd.f32 0.0, %v414
        %v416 = vpop.f32.mrb[0].mxu0
        %417 = vdwg.mxu0
        %419 = vrot.lane.b32.xlu0 %v332, 96
        %v420 = vpop.permute.xlu0 %419
        %v421 = vsel %vm343, %v332, 0
        %v423 = vsel %vm343, %v420, 0
        %425 = vmatprep.subr.mxu0 0.0
        %426 = vmatpush1.xpose.msra.mxu0 %v423
        %427 = vmatprep.subr.mxu0 0.0
        %428 = vmatpush1.xpose.msra.mxu0 0.0
        %429 = vmatprep.subr.mxu0 0.0
        %430 = vmatpush1.xpose.msra.mxu0 0.0
        %431 = vmatprep.subr.mxu0 0.0
        %432 = vmatpush1.xpose.msra.mxu0 0.0
        %433 = vmatprep.subr.mxu0 0.0
        %434 = vmatpush1.xpose.msra.mxu0 0.0
        %435 = vmatprep.subr.mxu0 0.0
        %436 = vmatpush1.xpose.msra.mxu0 0.0
        %437 = vmatprep.subr.mxu0 0.0
        %438 = vmatpush1.xpose.msra.mxu0 0.0
        %439 = vmatprep.subr.mxu0 0.0
        %440 = vmatpush1.xpose.msra.mxu0 0.0
        %441 = vmatprep.subr.mxu0 0.0
        %442 = vmatpush1.xpose.msra.mxu0 0.0
        %443 = vmatprep.subr.mxu0 0.0
        %444 = vmatpush1.xpose.msra.mxu0 0.0
        %445 = vmatprep.subr.mxu0 0.0
        %446 = vmatpush1.xpose.msra.mxu0 0.0
        %447 = vmatprep.subr.mxu0 0.0
        %448 = vmatpush1.xpose.msra.mxu0 0.0
        %449 = vmatprep.subr.mxu0 0.0
        %450 = vmatpush1.xpose.msra.mxu0 0.0
        %451 = vmatprep.subr.mxu0 0.0
        %452 = vmatpush1.xpose.msra.mxu0 0.0
        %453 = vmatprep.subr.mxu0 0.0
        %454 = vmatpush1.xpose.msra.mxu0 0.0
        %455 = vmatprep.subr.mxu0 0.0
        %456 = vmatpush1.xpose.msra.mxu0 0.0
        %457 = vmatprep.subr.mxu0 0.0
        %458 = vmatpush1.xpose.msra.mxu0 0.0
        %459 = vmatprep.subr.mxu0 0.0
        %460 = vmatpush1.xpose.msra.mxu0 0.0
        %461 = vmatprep.subr.mxu0 0.0
        %462 = vmatpush1.xpose.msra.mxu0 0.0
        %463 = vmatprep.subr.mxu0 0.0
        %464 = vmatpush1.xpose.msra.mxu0 0.0
        %465 = vmatprep.subr.mxu0 0.0
        %466 = vmatpush1.xpose.msra.mxu0 0.0
        %467 = vmatprep.subr.mxu0 0.0
        %468 = vmatpush1.xpose.msra.mxu0 0.0
        %469 = vmatprep.subr.mxu0 0.0
        %470 = vmatpush1.xpose.msra.mxu0 0.0
        %471 = vmatprep.subr.mxu0 0.0
        %472 = vmatpush1.xpose.msra.mxu0 0.0
        %473 = vmatprep.subr.mxu0 0.0
        %474 = vmatpush1.xpose.msra.mxu0 0.0
        %475 = vmatprep.subr.mxu0 0.0
        %476 = vmatpush1.xpose.msra.mxu0 0.0
        %477 = vmatprep.subr.mxu0 0.0
        %478 = vmatpush1.xpose.msra.mxu0 0.0
        %479 = vmatprep.subr.mxu0 0.0
        %480 = vmatpush1.xpose.msra.mxu0 0.0
        %481 = vmatprep.subr.mxu0 0.0
        %482 = vmatpush1.xpose.msra.mxu0 0.0
        %483 = vmatprep.subr.mxu0 0.0
        %484 = vmatpush1.xpose.msra.mxu0 0.0
        %485 = vmatprep.subr.mxu0 0.0
        %486 = vmatpush1.xpose.msra.mxu0 0.0
        %487 = vmatprep.subr.mxu0 0.0
        %488 = vmatpush1.xpose.msra.mxu0 0.0
        %489 = vmatprep.mubr.f32.mxu0 0.0
        %490 = vmatmul.mubr.f32.gmra.mrb[0].mxu0 %v421
        %v491 = vpop.f32.mrb[0].mxu0
        %v492 = vadd.f32 0.0, %v491
        %v493 = vpop.f32.mrb[0].mxu0
        %494 = vdwg.mxu0
        %v495 = vsel %vm339, 1, 0
        %vm496 = vcmp.eq.s32.totalorder %v495, 1
        %v497 = vsel %vm496, %v415, -1e+30
        %v498 = vsel %vm496, %v492, -1e+30
        %v499 = vsel %vm343, %v497, -inf
        %500 = vmax.xlane.f32.xlu0 %v499
        %v501 = vpop.xlane.xlu0 %500
        %v502 = vsel %vm343, %v498, -inf
        %503 = vmax.xlane.f32.xlu0 %v502
        %v504 = vpop.xlane.xlu0 %503
        %v505 = vsub.f32 %v497, %v501
        %v506 = vsub.f32 %v498, %v504
        %v507 = vmul.f32 %v505, 1.442695
        %v508 = vpow.pop %v507
        %v509 = vmul.f32 %v506, 1.442695
        %v510 = vpow.pop %v509
        %v511 = vsel %vm343, %v508, 0.0
        %512 = vadd.xlane.f32.xlu0 %v511
        %v513 = vpop.xlane.xlu0 %512
        %v514 = vsel %vm343, %v510, 0.0
        %515 = vadd.xlane.f32.xlu0 %v514
        %v516 = vpop.xlane.xlu0 %515
        %v517 = vrcp.pop %v513
        %v518 = vrcp.pop %v516
        %v519 = vmul.f32 %v508, %v517
        %v520 = vmul.f32 %v510, %v518
        %521 = vrot.lane.b32.xlu0 %v327, 64
        %v522 = vpop.permute.xlu0 %521
        %v525 = vsel %vm343, %v519, 0
        %527 = vmatprep.subr.mxu0 0.0
        %528 = vmatpush1.msra.mxu0 %v522
        %529 = vmatprep.subr.mxu0 0.0
        %530 = vmatpush1.msra.mxu0 0.0
        %531 = vmatprep.subr.mxu0 0.0
        %532 = vmatpush1.msra.mxu0 0.0
        %533 = vmatprep.subr.mxu0 0.0
        %534 = vmatpush1.msra.mxu0 0.0
        %535 = vmatprep.subr.mxu0 0.0
        %536 = vmatpush1.msra.mxu0 0.0
        %537 = vmatprep.subr.mxu0 0.0
        %538 = vmatpush1.msra.mxu0 0.0
        %539 = vmatprep.subr.mxu0 0.0
        %540 = vmatpush1.msra.mxu0 0.0
        %541 = vmatprep.subr.mxu0 0.0
        %542 = vmatpush1.msra.mxu0 0.0
        %543 = vmatprep.subr.mxu0 0.0
        %544 = vmatpush1.msra.mxu0 0.0
        %545 = vmatprep.subr.mxu0 0.0
        %546 = vmatpush1.msra.mxu0 0.0
        %547 = vmatprep.subr.mxu0 0.0
        %548 = vmatpush1.msra.mxu0 0.0
        %549 = vmatprep.subr.mxu0 0.0
        %550 = vmatpush1.msra.mxu0 0.0
        %551 = vmatprep.subr.mxu0 0.0
        %552 = vmatpush1.msra.mxu0 0.0
        %553 = vmatprep.subr.mxu0 0.0
        %554 = vmatpush1.msra.mxu0 0.0
        %555 = vmatprep.subr.mxu0 0.0
        %556 = vmatpush1.msra.mxu0 0.0
        %557 = vmatprep.subr.mxu0 0.0
        %558 = vmatpush1.msra.mxu0 0.0
        %559 = vmatprep.subr.mxu0 0.0
        %560 = vmatpush1.msra.mxu0 0.0
        %561 = vmatprep.subr.mxu0 0.0
        %562 = vmatpush1.msra.mxu0 0.0
        %563 = vmatprep.subr.mxu0 0.0
        %564 = vmatpush1.msra.mxu0 0.0
        %565 = vmatprep.subr.mxu0 0.0
        %566 = vmatpush1.msra.mxu0 0.0
        %567 = vmatprep.subr.mxu0 0.0
        %568 = vmatpush1.msra.mxu0 0.0
        %569 = vmatprep.subr.mxu0 0.0
        %570 = vmatpush1.msra.mxu0 0.0
        %571 = vmatprep.subr.mxu0 0.0
        %572 = vmatpush1.msra.mxu0 0.0
        %573 = vmatprep.subr.mxu0 0.0
        %574 = vmatpush1.msra.mxu0 0.0
        %575 = vmatprep.subr.mxu0 0.0
        %576 = vmatpush1.msra.mxu0 0.0
        %577 = vmatprep.subr.mxu0 0.0
        %578 = vmatpush1.msra.mxu0 0.0
        %579 = vmatprep.subr.mxu0 0.0
        %580 = vmatpush1.msra.mxu0 0.0
        %581 = vmatprep.subr.mxu0 0.0
        %582 = vmatpush1.msra.mxu0 0.0
        %583 = vmatprep.subr.mxu0 0.0
        %584 = vmatpush1.msra.mxu0 0.0
        %585 = vmatprep.subr.mxu0 0.0
        %586 = vmatpush1.msra.mxu0 0.0
        %587 = vmatprep.subr.mxu0 0.0
        %588 = vmatpush1.msra.mxu0 0.0
        %589 = vmatprep.subr.mxu0 0.0
        %590 = vmatpush1.msra.mxu0 0.0
        %591 = vmatprep.mubr.f32.mxu0 0.0
        %592 = vmatmul.mubr.f32.gmra.mrb[0].mxu0 %v525
        %v593 = vpop.f32.mrb[0].mxu0
        %v594 = vadd.f32 0.0, %v593
        %v595 = vpop.f32.mrb[0].mxu0
        %596 = vdwg.mxu0
        %597 = vrot.lane.b32.xlu0 %v332, 64
        %v598 = vpop.permute.xlu0 %597
        %v601 = vsel %vm343, %v520, 0
        %603 = vmatprep.subr.mxu0 0.0
        %604 = vmatpush1.msra.mxu0 %v598
        %605 = vmatprep.subr.mxu0 0.0
        %606 = vmatpush1.msra.mxu0 0.0
        %607 = vmatprep.subr.mxu0 0.0
        %608 = vmatpush1.msra.mxu0 0.0
        %609 = vmatprep.subr.mxu0 0.0
        %610 = vmatpush1.msra.mxu0 0.0
        %611 = vmatprep.subr.mxu0 0.0
        %612 = vmatpush1.msra.mxu0 0.0
        %613 = vmatprep.subr.mxu0 0.0
        %614 = vmatpush1.msra.mxu0 0.0
        %615 = vmatprep.subr.mxu0 0.0
        %616 = vmatpush1.msra.mxu0 0.0
        %617 = vmatprep.subr.mxu0 0.0
        %618 = vmatpush1.msra.mxu0 0.0
        %619 = vmatprep.subr.mxu0 0.0
        %620 = vmatpush1.msra.mxu0 0.0
        %621 = vmatprep.subr.mxu0 0.0
        %622 = vmatpush1.msra.mxu0 0.0
        %623 = vmatprep.subr.mxu0 0.0
        %624 = vmatpush1.msra.mxu0 0.0
        %625 = vmatprep.subr.mxu0 0.0
        %626 = vmatpush1.msra.mxu0 0.0
        %627 = vmatprep.subr.mxu0 0.0
        %628 = vmatpush1.msra.mxu0 0.0
        %629 = vmatprep.subr.mxu0 0.0
        %630 = vmatpush1.msra.mxu0 0.0
        %631 = vmatprep.subr.mxu0 0.0
        %632 = vmatpush1.msra.mxu0 0.0
        %633 = vmatprep.subr.mxu0 0.0
        %634 = vmatpush1.msra.mxu0 0.0
        %635 = vmatprep.subr.mxu0 0.0
        %636 = vmatpush1.msra.mxu0 0.0
        %637 = vmatprep.subr.mxu0 0.0
        %638 = vmatpush1.msra.mxu0 0.0
        %639 = vmatprep.subr.mxu0 0.0
        %640 = vmatpush1.msra.mxu0 0.0
        %641 = vmatprep.subr.mxu0 0.0
        %642 = vmatpush1.msra.mxu0 0.0
        %643 = vmatprep.subr.mxu0 0.0
        %644 = vmatpush1.msra.mxu0 0.0
        %645 = vmatprep.subr.mxu0 0.0
        %646 = vmatpush1.msra.mxu0 0.0
        %647 = vmatprep.subr.mxu0 0.0
        %648 = vmatpush1.msra.mxu0 0.0
        %649 = vmatprep.subr.mxu0 0.0
        %650 = vmatpush1.msra.mxu0 0.0
        %651 = vmatprep.subr.mxu0 0.0
        %652 = vmatpush1.msra.mxu0 0.0
        %653 = vmatprep.subr.mxu0 0.0
        %654 = vmatpush1.msra.mxu0 0.0
        %655 = vmatprep.subr.mxu0 0.0
        %656 = vmatpush1.msra.mxu0 0.0
        %657 = vmatprep.subr.mxu0 0.0
        %658 = vmatpush1.msra.mxu0 0.0
        %659 = vmatprep.subr.mxu0 0.0
        %660 = vmatpush1.msra.mxu0 0.0
        %661 = vmatprep.subr.mxu0 0.0
        %662 = vmatpush1.msra.mxu0 0.0
        %663 = vmatprep.subr.mxu0 0.0
        %664 = vmatpush1.msra.mxu0 0.0
        %665 = vmatprep.subr.mxu0 0.0
        %666 = vmatpush1.msra.mxu0 0.0
        %667 = vmatprep.mubr.f32.mxu0 0.0
        %668 = vmatmul.mubr.f32.gmra.mrb[0].mxu0 %v601
        %v669 = vpop.f32.mrb[0].mxu0
        %v670 = vadd.f32 0.0, %v669
        %v671 = vpop.f32.mrb[0].mxu0
        %672 = vdwg.mxu0
        %673 = vrot.lane.b32.xlu0 %v327, 120
        %v674 = vpop.permute.xlu0 %673
        %675 = vrot.lane.b32.xlu0 %v327, 88
        %v676 = vpop.permute.xlu0 %675
        %v677 = vsel %vm343, %v674, 0
        %v679 = vsel %vm343, %v676, 0
        %681 = vmatprep.subr.mxu0 0.0
        %682 = vmatpush1.xpose.msra.mxu0 %v679
        %683 = vmatprep.subr.mxu0 0.0
        %684 = vmatpush1.xpose.msra.mxu0 0.0
        %685 = vmatprep.subr.mxu0 0.0
        %686 = vmatpush1.xpose.msra.mxu0 0.0
        %687 = vmatprep.subr.mxu0 0.0
        %688 = vmatpush1.xpose.msra.mxu0 0.0
        %689 = vmatprep.subr.mxu0 0.0
        %690 = vmatpush1.xpose.msra.mxu0 0.0
        %691 = vmatprep.subr.mxu0 0.0
        %692 = vmatpush1.xpose.msra.mxu0 0.0
        %693 = vmatprep.subr.mxu0 0.0
        %694 = vmatpush1.xpose.msra.mxu0 0.0
        %695 = vmatprep.subr.mxu0 0.0
        %696 = vmatpush1.xpose.msra.mxu0 0.0
        %697 = vmatprep.subr.mxu0 0.0
        %698 = vmatpush1.xpose.msra.mxu0 0.0
        %699 = vmatprep.subr.mxu0 0.0
        %700 = vmatpush1.xpose.msra.mxu0 0.0
        %701 = vmatprep.subr.mxu0 0.0
        %702 = vmatpush1.xpose.msra.mxu0 0.0
        %703 = vmatprep.subr.mxu0 0.0
        %704 = vmatpush1.xpose.msra.mxu0 0.0
        %705 = vmatprep.subr.mxu0 0.0
        %706 = vmatpush1.xpose.msra.mxu0 0.0
        %707 = vmatprep.subr.mxu0 0.0
        %708 = vmatpush1.xpose.msra.mxu0 0.0
        %709 = vmatprep.subr.mxu0 0.0
        %710 = vmatpush1.xpose.msra.mxu0 0.0
        %711 = vmatprep.subr.mxu0 0.0
        %712 = vmatpush1.xpose.msra.mxu0 0.0
        %713 = vmatprep.subr.mxu0 0.0
        %714 = vmatpush1.xpose.msra.mxu0 0.0
        %715 = vmatprep.subr.mxu0 0.0
        %716 = vmatpush1.xpose.msra.mxu0 0.0
        %717 = vmatprep.subr.mxu0 0.0
        %718 = vmatpush1.xpose.msra.mxu0 0.0
        %719 = vmatprep.subr.mxu0 0.0
        %720 = vmatpush1.xpose.msra.mxu0 0.0
        %721 = vmatprep.subr.mxu0 0.0
        %722 = vmatpush1.xpose.msra.mxu0 0.0
        %723 = vmatprep.subr.mxu0 0.0
        %724 = vmatpush1.xpose.msra.mxu0 0.0
        %725 = vmatprep.subr.mxu0 0.0
        %726 = vmatpush1.xpose.msra.mxu0 0.0
        %727 = vmatprep.subr.mxu0 0.0
        %728 = vmatpush1.xpose.msra.mxu0 0.0
        %729 = vmatprep.subr.mxu0 0.0
        %730 = vmatpush1.xpose.msra.mxu0 0.0
        %731 = vmatprep.subr.mxu0 0.0
        %732 = vmatpush1.xpose.msra.mxu0 0.0
        %733 = vmatprep.subr.mxu0 0.0
        %734 = vmatpush1.xpose.msra.mxu0 0.0
        %735 = vmatprep.subr.mxu0 0.0
        %736 = vmatpush1.xpose.msra.mxu0 0.0
        %737 = vmatprep.subr.mxu0 0.0
        %738 = vmatpush1.xpose.msra.mxu0 0.0
        %739 = vmatprep.subr.mxu0 0.0
        %740 = vmatpush1.xpose.msra.mxu0 0.0
        %741 = vmatprep.subr.mxu0 0.0
        %742 = vmatpush1.xpose.msra.mxu0 0.0
        %743 = vmatprep.subr.mxu0 0.0
        %744 = vmatpush1.xpose.msra.mxu0 0.0
        %745 = vmatprep.mubr.f32.mxu0 0.0
        %746 = vmatmul.mubr.f32.gmra.mrb[0].mxu0 %v677
        %v747 = vpop.f32.mrb[0].mxu0
        %v748 = vadd.f32 0.0, %v747
        %v749 = vpop.f32.mrb[0].mxu0
        %750 = vdwg.mxu0
        %751 = vrot.lane.b32.xlu0 %v332, 120
        %v752 = vpop.permute.xlu0 %751
        %753 = vrot.lane.b32.xlu0 %v332, 88
        %v754 = vpop.permute.xlu0 %753
        %v755 = vsel %vm343, %v752, 0
        %v757 = vsel %vm343, %v754, 0
        %759 = vmatprep.subr.mxu0 0.0
        %760 = vmatpush1.xpose.msra.mxu0 %v757
        %761 = vmatprep.subr.mxu0 0.0
        %762 = vmatpush1.xpose.msra.mxu0 0.0
        %763 = vmatprep.subr.mxu0 0.0
        %764 = vmatpush1.xpose.msra.mxu0 0.0
        %765 = vmatprep.subr.mxu0 0.0
        %766 = vmatpush1.xpose.msra.mxu0 0.0
        %767 = vmatprep.subr.mxu0 0.0
        %768 = vmatpush1.xpose.msra.mxu0 0.0
        %769 = vmatprep.subr.mxu0 0.0
        %770 = vmatpush1.xpose.msra.mxu0 0.0
        %771 = vmatprep.subr.mxu0 0.0
        %772 = vmatpush1.xpose.msra.mxu0 0.0
        %773 = vmatprep.subr.mxu0 0.0
        %774 = vmatpush1.xpose.msra.mxu0 0.0
        %775 = vmatprep.subr.mxu0 0.0
        %776 = vmatpush1.xpose.msra.mxu0 0.0
        %777 = vmatprep.subr.mxu0 0.0
        %778 = vmatpush1.xpose.msra.mxu0 0.0
        %779 = vmatprep.subr.mxu0 0.0
        %780 = vmatpush1.xpose.msra.mxu0 0.0
        %781 = vmatprep.subr.mxu0 0.0
        %782 = vmatpush1.xpose.msra.mxu0 0.0
        %783 = vmatprep.subr.mxu0 0.0
        %784 = vmatpush1.xpose.msra.mxu0 0.0
        %785 = vmatprep.subr.mxu0 0.0
        %786 = vmatpush1.xpose.msra.mxu0 0.0
        %787 = vmatprep.subr.mxu0 0.0
        %788 = vmatpush1.xpose.msra.mxu0 0.0
        %789 = vmatprep.subr.mxu0 0.0
        %790 = vmatpush1.xpose.msra.mxu0 0.0
        %791 = vmatprep.subr.mxu0 0.0
        %792 = vmatpush1.xpose.msra.mxu0 0.0
        %793 = vmatprep.subr.mxu0 0.0
        %794 = vmatpush1.xpose.msra.mxu0 0.0
        %795 = vmatprep.subr.mxu0 0.0
        %796 = vmatpush1.xpose.msra.mxu0 0.0
        %797 = vmatprep.subr.mxu0 0.0
        %798 = vmatpush1.xpose.msra.mxu0 0.0
        %799 = vmatprep.subr.mxu0 0.0
        %800 = vmatpush1.xpose.msra.mxu0 0.0
        %801 = vmatprep.subr.mxu0 0.0
        %802 = vmatpush1.xpose.msra.mxu0 0.0
        %803 = vmatprep.subr.mxu0 0.0
        %804 = vmatpush1.xpose.msra.mxu0 0.0
        %805 = vmatprep.subr.mxu0 0.0
        %806 = vmatpush1.xpose.msra.mxu0 0.0
        %807 = vmatprep.subr.mxu0 0.0
        %808 = vmatpush1.xpose.msra.mxu0 0.0
        %809 = vmatprep.subr.mxu0 0.0
        %810 = vmatpush1.xpose.msra.mxu0 0.0
        %811 = vmatprep.subr.mxu0 0.0
        %812 = vmatpush1.xpose.msra.mxu0 0.0
        %813 = vmatprep.subr.mxu0 0.0
        %814 = vmatpush1.xpose.msra.mxu0 0.0
        %815 = vmatprep.subr.mxu0 0.0
        %816 = vmatpush1.xpose.msra.mxu0 0.0
        %817 = vmatprep.subr.mxu0 0.0
        %818 = vmatpush1.xpose.msra.mxu0 0.0
        %819 = vmatprep.subr.mxu0 0.0
        %820 = vmatpush1.xpose.msra.mxu0 0.0
        %821 = vmatprep.subr.mxu0 0.0
        %822 = vmatpush1.xpose.msra.mxu0 0.0
        %823 = vmatprep.mubr.f32.mxu0 0.0
        %824 = vmatmul.mubr.f32.gmra.mrb[0].mxu0 %v755
        %v825 = vpop.f32.mrb[0].mxu0
        %v826 = vadd.f32 0.0, %v825
        %v827 = vpop.f32.mrb[0].mxu0
        %828 = vdwg.mxu0
        %v829 = vsel %vm496, %v748, -1e+30
        %v830 = vsel %vm496, %v826, -1e+30
        %v831 = vsel %vm343, %v829, -inf
        %832 = vmax.xlane.f32.xlu0 %v831
        %v833 = vpop.xlane.xlu0 %832
        %v834 = vsel %vm343, %v830, -inf
        %835 = vmax.xlane.f32.xlu0 %v834
        %v836 = vpop.xlane.xlu0 %835
        %v837 = vsub.f32 %v829, %v833
        %v838 = vsub.f32 %v830, %v836
        %v839 = vmul.f32 %v837, 1.442695
        %v840 = vpow.pop %v839
        %v841 = vmul.f32 %v838, 1.442695
        %v842 = vpow.pop %v841
        %v843 = vsel %vm343, %v840, 0.0
        %844 = vadd.xlane.f32.xlu0 %v843
        %v845 = vpop.xlane.xlu0 %844
        %v846 = vsel %vm343, %v842, 0.0
        %847 = vadd.xlane.f32.xlu0 %v846
        %v848 = vpop.xlane.xlu0 %847
        %v849 = vrcp.pop %v845
        %v850 = vrcp.pop %v848
        %v851 = vmul.f32 %v840, %v849
        %v852 = vmul.f32 %v842, %v850
        %853 = vrot.lane.b32.xlu0 %v327, 56
        %v854 = vpop.permute.xlu0 %853
        %v857 = vsel %vm343, %v851, 0
        %859 = vmatprep.subr.mxu0 0.0
        %860 = vmatpush1.msra.mxu0 %v854
        %861 = vmatprep.subr.mxu0 0.0
        %862 = vmatpush1.msra.mxu0 0.0
        %863 = vmatprep.subr.mxu0 0.0
        %864 = vmatpush1.msra.mxu0 0.0
        %865 = vmatprep.subr.mxu0 0.0
        %866 = vmatpush1.msra.mxu0 0.0
        %867 = vmatprep.subr.mxu0 0.0
        %868 = vmatpush1.msra.mxu0 0.0
        %869 = vmatprep.subr.mxu0 0.0
        %870 = vmatpush1.msra.mxu0 0.0
        %871 = vmatprep.subr.mxu0 0.0
        %872 = vmatpush1.msra.mxu0 0.0
        %873 = vmatprep.subr.mxu0 0.0
        %874 = vmatpush1.msra.mxu0 0.0
        %875 = vmatprep.subr.mxu0 0.0
        %876 = vmatpush1.msra.mxu0 0.0
        %877 = vmatprep.subr.mxu0 0.0
        %878 = vmatpush1.msra.mxu0 0.0
        %879 = vmatprep.subr.mxu0 0.0
        %880 = vmatpush1.msra.mxu0 0.0
        %881 = vmatprep.subr.mxu0 0.0
        %882 = vmatpush1.msra.mxu0 0.0
        %883 = vmatprep.subr.mxu0 0.0
        %884 = vmatpush1.msra.mxu0 0.0
        %885 = vmatprep.subr.mxu0 0.0
        %886 = vmatpush1.msra.mxu0 0.0
        %887 = vmatprep.subr.mxu0 0.0
        %888 = vmatpush1.msra.mxu0 0.0
        %889 = vmatprep.subr.mxu0 0.0
        %890 = vmatpush1.msra.mxu0 0.0
        %891 = vmatprep.subr.mxu0 0.0
        %892 = vmatpush1.msra.mxu0 0.0
        %893 = vmatprep.subr.mxu0 0.0
        %894 = vmatpush1.msra.mxu0 0.0
        %895 = vmatprep.subr.mxu0 0.0
        %896 = vmatpush1.msra.mxu0 0.0
        %897 = vmatprep.subr.mxu0 0.0
        %898 = vmatpush1.msra.mxu0 0.0
        %899 = vmatprep.subr.mxu0 0.0
        %900 = vmatpush1.msra.mxu0 0.0
        %901 = vmatprep.subr.mxu0 0.0
        %902 = vmatpush1.msra.mxu0 0.0
        %903 = vmatprep.subr.mxu0 0.0
        %904 = vmatpush1.msra.mxu0 0.0
        %905 = vmatprep.subr.mxu0 0.0
        %906 = vmatpush1.msra.mxu0 0.0
        %907 = vmatprep.subr.mxu0 0.0
        %908 = vmatpush1.msra.mxu0 0.0
        %909 = vmatprep.subr.mxu0 0.0
        %910 = vmatpush1.msra.mxu0 0.0
        %911 = vmatprep.subr.mxu0 0.0
        %912 = vmatpush1.msra.mxu0 0.0
        %913 = vmatprep.subr.mxu0 0.0
        %914 = vmatpush1.msra.mxu0 0.0
        %915 = vmatprep.subr.mxu0 0.0
        %916 = vmatpush1.msra.mxu0 0.0
        %917 = vmatprep.subr.mxu0 0.0
        %918 = vmatpush1.msra.mxu0 0.0
        %919 = vmatprep.subr.mxu0 0.0
        %920 = vmatpush1.msra.mxu0 0.0
        %921 = vmatprep.subr.mxu0 0.0
        %922 = vmatpush1.msra.mxu0 0.0
        %923 = vmatprep.mubr.f32.mxu0 0.0
        %924 = vmatmul.mubr.f32.gmra.mrb[0].mxu0 %v857
        %v925 = vpop.f32.mrb[0].mxu0
        %v926 = vadd.f32 0.0, %v925
        %v927 = vpop.f32.mrb[0].mxu0
        %928 = vdwg.mxu0
        %929 = vrot.lane.b32.xlu0 %v332, 56
        %v930 = vpop.permute.xlu0 %929
        %v933 = vsel %vm343, %v852, 0
        %935 = vmatprep.subr.mxu0 0.0
        %936 = vmatpush1.msra.mxu0 %v930
        %937 = vmatprep.subr.mxu0 0.0
        %938 = vmatpush1.msra.mxu0 0.0
        %939 = vmatprep.subr.mxu0 0.0
        %940 = vmatpush1.msra.mxu0 0.0
        %941 = vmatprep.subr.mxu0 0.0
        %942 = vmatpush1.msra.mxu0 0.0
        %943 = vmatprep.subr.mxu0 0.0
        %944 = vmatpush1.msra.mxu0 0.0
        %945 = vmatprep.subr.mxu0 0.0
        %946 = vmatpush1.msra.mxu0 0.0
        %947 = vmatprep.subr.mxu0 0.0
        %948 = vmatpush1.msra.mxu0 0.0
        %949 = vmatprep.subr.mxu0 0.0
        %950 = vmatpush1.msra.mxu0 0.0
        %951 = vmatprep.subr.mxu0 0.0
        %952 = vmatpush1.msra.mxu0 0.0
        %953 = vmatprep.subr.mxu0 0.0
        %954 = vmatpush1.msra.mxu0 0.0
        %955 = vmatprep.subr.mxu0 0.0
        %956 = vmatpush1.msra.mxu0 0.0
        %957 = vmatprep.subr.mxu0 0.0
        %958 = vmatpush1.msra.mxu0 0.0
        %959 = vmatprep.subr.mxu0 0.0
        %960 = vmatpush1.msra.mxu0 0.0
        %961 = vmatprep.subr.mxu0 0.0
        %962 = vmatpush1.msra.mxu0 0.0
        %963 = vmatprep.subr.mxu0 0.0
        %964 = vmatpush1.msra.mxu0 0.0
        %965 = vmatprep.subr.mxu0 0.0
        %966 = vmatpush1.msra.mxu0 0.0
        %967 = vmatprep.subr.mxu0 0.0
        %968 = vmatpush1.msra.mxu0 0.0
        %969 = vmatprep.subr.mxu0 0.0
        %970 = vmatpush1.msra.mxu0 0.0
        %971 = vmatprep.subr.mxu0 0.0
        %972 = vmatpush1.msra.mxu0 0.0
        %973 = vmatprep.subr.mxu0 0.0
        %974 = vmatpush1.msra.mxu0 0.0
        %975 = vmatprep.subr.mxu0 0.0
        %976 = vmatpush1.msra.mxu0 0.0
        %977 = vmatprep.subr.mxu0 0.0
        %978 = vmatpush1.msra.mxu0 0.0
        %979 = vmatprep.subr.mxu0 0.0
        %980 = vmatpush1.msra.mxu0 0.0
        %981 = vmatprep.subr.mxu0 0.0
        %982 = vmatpush1.msra.mxu0 0.0
        %983 = vmatprep.subr.mxu0 0.0
        %984 = vmatpush1.msra.mxu0 0.0
        %985 = vmatprep.subr.mxu0 0.0
        %986 = vmatpush1.msra.mxu0 0.0
        %987 = vmatprep.subr.mxu0 0.0
        %988 = vmatpush1.msra.mxu0 0.0
        %989 = vmatprep.subr.mxu0 0.0
        %990 = vmatpush1.msra.mxu0 0.0
        %991 = vmatprep.subr.mxu0 0.0
        %992 = vmatpush1.msra.mxu0 0.0
        %993 = vmatprep.subr.mxu0 0.0
        %994 = vmatpush1.msra.mxu0 0.0
        %995 = vmatprep.subr.mxu0 0.0
        %996 = vmatpush1.msra.mxu0 0.0
        %997 = vmatprep.subr.mxu0 0.0
        %998 = vmatpush1.msra.mxu0 0.0
        %999 = vmatprep.mubr.f32.mxu0 0.0
        %1000 = vmatmul.mubr.f32.gmra.mrb[0].mxu0 %v933
        %v1001 = vpop.f32.mrb[0].mxu0
        %v1002 = vadd.f32 0.0, %v1001
        %v1003 = vpop.f32.mrb[0].mxu0
        %1004 = vdwg.mxu0
        %1005 = vrot.lane.b32.xlu0 %v327, 112
        %v1006 = vpop.permute.xlu0 %1005
        %1007 = vrot.lane.b32.xlu0 %v327, 80
        %v1008 = vpop.permute.xlu0 %1007
        %v1009 = vsel %vm343, %v1006, 0
        %v1011 = vsel %vm343, %v1008, 0
        %1013 = vmatprep.subr.mxu0 0.0
        %1014 = vmatpush1.xpose.msra.mxu0 %v1011
        %1015 = vmatprep.subr.mxu0 0.0
        %1016 = vmatpush1.xpose.msra.mxu0 0.0
        %1017 = vmatprep.subr.mxu0 0.0
        %1018 = vmatpush1.xpose.msra.mxu0 0.0
        %1019 = vmatprep.subr.mxu0 0.0
        %1020 = vmatpush1.xpose.msra.mxu0 0.0
        %1021 = vmatprep.subr.mxu0 0.0
        %1022 = vmatpush1.xpose.msra.mxu0 0.0
        %1023 = vmatprep.subr.mxu0 0.0
        %1024 = vmatpush1.xpose.msra.mxu0 0.0
        %1025 = vmatprep.subr.mxu0 0.0
        %1026 = vmatpush1.xpose.msra.mxu0 0.0
        %1027 = vmatprep.subr.mxu0 0.0
        %1028 = vmatpush1.xpose.msra.mxu0 0.0
        %1029 = vmatprep.subr.mxu0 0.0
        %1030 = vmatpush1.xpose.msra.mxu0 0.0
        %1031 = vmatprep.subr.mxu0 0.0
        %1032 = vmatpush1.xpose.msra.mxu0 0.0
        %1033 = vmatprep.subr.mxu0 0.0
        %1034 = vmatpush1.xpose.msra.mxu0 0.0
        %1035 = vmatprep.subr.mxu0 0.0
        %1036 = vmatpush1.xpose.msra.mxu0 0.0
        %1037 = vmatprep.subr.mxu0 0.0
        %1038 = vmatpush1.xpose.msra.mxu0 0.0
        %1039 = vmatprep.subr.mxu0 0.0
        %1040 = vmatpush1.xpose.msra.mxu0 0.0
        %1041 = vmatprep.subr.mxu0 0.0
        %1042 = vmatpush1.xpose.msra.mxu0 0.0
        %1043 = vmatprep.subr.mxu0 0.0
        %1044 = vmatpush1.xpose.msra.mxu0 0.0
        %1045 = vmatprep.subr.mxu0 0.0
        %1046 = vmatpush1.xpose.msra.mxu0 0.0
        %1047 = vmatprep.subr.mxu0 0.0
        %1048 = vmatpush1.xpose.msra.mxu0 0.0
        %1049 = vmatprep.subr.mxu0 0.0
        %1050 = vmatpush1.xpose.msra.mxu0 0.0
        %1051 = vmatprep.subr.mxu0 0.0
        %1052 = vmatpush1.xpose.msra.mxu0 0.0
        %1053 = vmatprep.subr.mxu0 0.0
        %1054 = vmatpush1.xpose.msra.mxu0 0.0
        %1055 = vmatprep.subr.mxu0 0.0
        %1056 = vmatpush1.xpose.msra.mxu0 0.0
        %1057 = vmatprep.subr.mxu0 0.0
        %1058 = vmatpush1.xpose.msra.mxu0 0.0
        %1059 = vmatprep.subr.mxu0 0.0
        %1060 = vmatpush1.xpose.msra.mxu0 0.0
        %1061 = vmatprep.subr.mxu0 0.0
        %1062 = vmatpush1.xpose.msra.mxu0 0.0
        %1063 = vmatprep.subr.mxu0 0.0
        %1064 = vmatpush1.xpose.msra.mxu0 0.0
        %1065 = vmatprep.subr.mxu0 0.0
        %1066 = vmatpush1.xpose.msra.mxu0 0.0
        %1067 = vmatprep.subr.mxu0 0.0
        %1068 = vmatpush1.xpose.msra.mxu0 0.0
        %1069 = vmatprep.subr.mxu0 0.0
        %1070 = vmatpush1.xpose.msra.mxu0 0.0
        %1071 = vmatprep.subr.mxu0 0.0
        %1072 = vmatpush1.xpose.msra.mxu0 0.0
        %1073 = vmatprep.subr.mxu0 0.0
        %1074 = vmatpush1.xpose.msra.mxu0 0.0
        %1075 = vmatprep.subr.mxu0 0.0
        %1076 = vmatpush1.xpose.msra.mxu0 0.0
        %1077 = vmatprep.mubr.f32.mxu0 0.0
        %1078 = vmatmul.mubr.f32.gmra.mrb[0].mxu0 %v1009
        %v1079 = vpop.f32.mrb[0].mxu0
        %v1080 = vadd.f32 0.0, %v1079
        %v1081 = vpop.f32.mrb[0].mxu0
        %1082 = vdwg.mxu0
        %1083 = vrot.lane.b32.xlu0 %v332, 112
        %v1084 = vpop.permute.xlu0 %1083
        %1085 = vrot.lane.b32.xlu0 %v332, 80
        %v1086 = vpop.permute.xlu0 %1085
        %v1087 = vsel %vm343, %v1084, 0
        %v1089 = vsel %vm343, %v1086, 0
        %1091 = vmatprep.subr.mxu0 0.0
        %1092 = vmatpush1.xpose.msra.mxu0 %v1089
        %1093 = vmatprep.subr.mxu0 0.0
        %1094 = vmatpush1.xpose.msra.mxu0 0.0
        %1095 = vmatprep.subr.mxu0 0.0
        %1096 = vmatpush1.xpose.msra.mxu0 0.0
        %1097 = vmatprep.subr.mxu0 0.0
        %1098 = vmatpush1.xpose.msra.mxu0 0.0
        %1099 = vmatprep.subr.mxu0 0.0
        %1100 = vmatpush1.xpose.msra.mxu0 0.0
        %1101 = vmatprep.subr.mxu0 0.0
        %1102 = vmatpush1.xpose.msra.mxu0 0.0
        %1103 = vmatprep.subr.mxu0 0.0
        %1104 = vmatpush1.xpose.msra.mxu0 0.0
        %1105 = vmatprep.subr.mxu0 0.0
        %1106 = vmatpush1.xpose.msra.mxu0 0.0
        %1107 = vmatprep.subr.mxu0 0.0
        %1108 = vmatpush1.xpose.msra.mxu0 0.0
        %1109 = vmatprep.subr.mxu0 0.0
        %1110 = vmatpush1.xpose.msra.mxu0 0.0
        %1111 = vmatprep.subr.mxu0 0.0
        %1112 = vmatpush1.xpose.msra.mxu0 0.0
        %1113 = vmatprep.subr.mxu0 0.0
        %1114 = vmatpush1.xpose.msra.mxu0 0.0
        %1115 = vmatprep.subr.mxu0 0.0
        %1116 = vmatpush1.xpose.msra.mxu0 0.0
        %1117 = vmatprep.subr.mxu0 0.0
        %1118 = vmatpush1.xpose.msra.mxu0 0.0
        %1119 = vmatprep.subr.mxu0 0.0
        %1120 = vmatpush1.xpose.msra.mxu0 0.0
        %1121 = vmatprep.subr.mxu0 0.0
        %1122 = vmatpush1.xpose.msra.mxu0 0.0
        %1123 = vmatprep.subr.mxu0 0.0
        %1124 = vmatpush1.xpose.msra.mxu0 0.0
        %1125 = vmatprep.subr.mxu0 0.0
        %1126 = vmatpush1.xpose.msra.mxu0 0.0
        %1127 = vmatprep.subr.mxu0 0.0
        %1128 = vmatpush1.xpose.msra.mxu0 0.0
        %1129 = vmatprep.subr.mxu0 0.0
        %1130 = vmatpush1.xpose.msra.mxu0 0.0
        %1131 = vmatprep.subr.mxu0 0.0
        %1132 = vmatpush1.xpose.msra.mxu0 0.0
        %1133 = vmatprep.subr.mxu0 0.0
        %1134 = vmatpush1.xpose.msra.mxu0 0.0
        %1135 = vmatprep.subr.mxu0 0.0
        %1136 = vmatpush1.xpose.msra.mxu0 0.0
        %1137 = vmatprep.subr.mxu0 0.0
        %1138 = vmatpush1.xpose.msra.mxu0 0.0
        %1139 = vmatprep.subr.mxu0 0.0
        %1140 = vmatpush1.xpose.msra.mxu0 0.0
        %1141 = vmatprep.subr.mxu0 0.0
        %1142 = vmatpush1.xpose.msra.mxu0 0.0
        %1143 = vmatprep.subr.mxu0 0.0
        %1144 = vmatpush1.xpose.msra.mxu0 0.0
        %1145 = vmatprep.subr.mxu0 0.0
        %1146 = vmatpush1.xpose.msra.mxu0 0.0
        %1147 = vmatprep.subr.mxu0 0.0
        %1148 = vmatpush1.xpose.msra.mxu0 0.0
        %1149 = vmatprep.subr.mxu0 0.0
        %1150 = vmatpush1.xpose.msra.mxu0 0.0
        %1151 = vmatprep.subr.mxu0 0.0
        %1152 = vmatpush1.xpose.msra.mxu0 0.0
        %1153 = vmatprep.subr.mxu0 0.0
        %1154 = vmatpush1.xpose.msra.mxu0 0.0
        %1155 = vmatprep.mubr.f32.mxu0 0.0
        %1156 = vmatmul.mubr.f32.gmra.mrb[0].mxu0 %v1087
        %v1157 = vpop.f32.mrb[0].mxu0
        %v1158 = vadd.f32 0.0, %v1157
        %v1159 = vpop.f32.mrb[0].mxu0
        %1160 = vdwg.mxu0
        %v1161 = vsel %vm496, %v1080, -1e+30
        %v1162 = vsel %vm496, %v1158, -1e+30
        %v1163 = vsel %vm343, %v1161, -inf
        %1164 = vmax.xlane.f32.xlu0 %v1163
        %v1165 = vpop.xlane.xlu0 %1164
        %v1166 = vsel %vm343, %v1162, -inf
        %1167 = vmax.xlane.f32.xlu0 %v1166
        %v1168 = vpop.xlane.xlu0 %1167
        %v1169 = vsub.f32 %v1161, %v1165
        %v1170 = vsub.f32 %v1162, %v1168
        %v1171 = vmul.f32 %v1169, 1.442695
        %v1172 = vpow.pop %v1171
        %v1173 = vmul.f32 %v1170, 1.442695
        %v1174 = vpow.pop %v1173
        %v1175 = vsel %vm343, %v1172, 0.0
        %1176 = vadd.xlane.f32.xlu0 %v1175
        %v1177 = vpop.xlane.xlu0 %1176
        %v1178 = vsel %vm343, %v1174, 0.0
        %1179 = vadd.xlane.f32.xlu0 %v1178
        %v1180 = vpop.xlane.xlu0 %1179
        %v1181 = vrcp.pop %v1177
        %v1182 = vrcp.pop %v1180
        %v1183 = vmul.f32 %v1172, %v1181
        %v1184 = vmul.f32 %v1174, %v1182
        %1185 = vrot.lane.b32.xlu0 %v327, 48
        %v1186 = vpop.permute.xlu0 %1185
        %v1189 = vsel %vm343, %v1183, 0
        %1191 = vmatprep.subr.mxu0 0.0
        %1192 = vmatpush1.msra.mxu0 %v1186
        %1193 = vmatprep.subr.mxu0 0.0
        %1194 = vmatpush1.msra.mxu0 0.0
        %1195 = vmatprep.subr.mxu0 0.0
        %1196 = vmatpush1.msra.mxu0 0.0
        %1197 = vmatprep.subr.mxu0 0.0
        %1198 = vmatpush1.msra.mxu0 0.0
        %1199 = vmatprep.subr.mxu0 0.0
        %1200 = vmatpush1.msra.mxu0 0.0
        %1201 = vmatprep.subr.mxu0 0.0
        %1202 = vmatpush1.msra.mxu0 0.0
        %1203 = vmatprep.subr.mxu0 0.0
        %1204 = vmatpush1.msra.mxu0 0.0
        %1205 = vmatprep.subr.mxu0 0.0
        %1206 = vmatpush1.msra.mxu0 0.0
        %1207 = vmatprep.subr.mxu0 0.0
        %1208 = vmatpush1.msra.mxu0 0.0
        %1209 = vmatprep.subr.mxu0 0.0
        %1210 = vmatpush1.msra.mxu0 0.0
        %1211 = vmatprep.subr.mxu0 0.0
        %1212 = vmatpush1.msra.mxu0 0.0
        %1213 = vmatprep.subr.mxu0 0.0
        %1214 = vmatpush1.msra.mxu0 0.0
        %1215 = vmatprep.subr.mxu0 0.0
        %1216 = vmatpush1.msra.mxu0 0.0
        %1217 = vmatprep.subr.mxu0 0.0
        %1218 = vmatpush1.msra.mxu0 0.0
        %1219 = vmatprep.subr.mxu0 0.0
        %1220 = vmatpush1.msra.mxu0 0.0
        %1221 = vmatprep.subr.mxu0 0.0
        %1222 = vmatpush1.msra.mxu0 0.0
        %1223 = vmatprep.subr.mxu0 0.0
        %1224 = vmatpush1.msra.mxu0 0.0
        %1225 = vmatprep.subr.mxu0 0.0
        %1226 = vmatpush1.msra.mxu0 0.0
        %1227 = vmatprep.subr.mxu0 0.0
        %1228 = vmatpush1.msra.mxu0 0.0
        %1229 = vmatprep.subr.mxu0 0.0
        %1230 = vmatpush1.msra.mxu0 0.0
        %1231 = vmatprep.subr.mxu0 0.0
        %1232 = vmatpush1.msra.mxu0 0.0
        %1233 = vmatprep.subr.mxu0 0.0
        %1234 = vmatpush1.msra.mxu0 0.0
        %1235 = vmatprep.subr.mxu0 0.0
        %1236 = vmatpush1.msra.mxu0 0.0
        %1237 = vmatprep.subr.mxu0 0.0
        %1238 = vmatpush1.msra.mxu0 0.0
        %1239 = vmatprep.subr.mxu0 0.0
        %1240 = vmatpush1.msra.mxu0 0.0
        %1241 = vmatprep.subr.mxu0 0.0
        %1242 = vmatpush1.msra.mxu0 0.0
        %1243 = vmatprep.subr.mxu0 0.0
        %1244 = vmatpush1.msra.mxu0 0.0
        %1245 = vmatprep.subr.mxu0 0.0
        %1246 = vmatpush1.msra.mxu0 0.0
        %1247 = vmatprep.subr.mxu0 0.0
        %1248 = vmatpush1.msra.mxu0 0.0
        %1249 = vmatprep.subr.mxu0 0.0
        %1250 = vmatpush1.msra.mxu0 0.0
        %1251 = vmatprep.subr.mxu0 0.0
        %1252 = vmatpush1.msra.mxu0 0.0
        %1253 = vmatprep.subr.mxu0 0.0
        %1254 = vmatpush1.msra.mxu0 0.0
        %1255 = vmatprep.mubr.f32.mxu0 0.0
        %1256 = vmatmul.mubr.f32.gmra.mrb[0].mxu0 %v1189
        %v1257 = vpop.f32.mrb[0].mxu0
        %v1258 = vadd.f32 0.0, %v1257
        %v1259 = vpop.f32.mrb[0].mxu0
        %1260 = vdwg.mxu0
        %1261 = vrot.lane.b32.xlu0 %v332, 48
        %v1262 = vpop.permute.xlu0 %1261
        %v1265 = vsel %vm343, %v1184, 0
        %1267 = vmatprep.subr.mxu0 0.0
        %1268 = vmatpush1.msra.mxu0 %v1262
        %1269 = vmatprep.subr.mxu0 0.0
        %1270 = vmatpush1.msra.mxu0 0.0
        %1271 = vmatprep.subr.mxu0 0.0
        %1272 = vmatpush1.msra.mxu0 0.0
        %1273 = vmatprep.subr.mxu0 0.0
        %1274 = vmatpush1.msra.mxu0 0.0
        %1275 = vmatprep.subr.mxu0 0.0
        %1276 = vmatpush1.msra.mxu0 0.0
        %1277 = vmatprep.subr.mxu0 0.0
        %1278 = vmatpush1.msra.mxu0 0.0
        %1279 = vmatprep.subr.mxu0 0.0
        %1280 = vmatpush1.msra.mxu0 0.0
        %1281 = vmatprep.subr.mxu0 0.0
        %1282 = vmatpush1.msra.mxu0 0.0
        %1283 = vmatprep.subr.mxu0 0.0
        %1284 = vmatpush1.msra.mxu0 0.0
        %1285 = vmatprep.subr.mxu0 0.0
        %1286 = vmatpush1.msra.mxu0 0.0
        %1287 = vmatprep.subr.mxu0 0.0
        %1288 = vmatpush1.msra.mxu0 0.0
        %1289 = vmatprep.subr.mxu0 0.0
        %1290 = vmatpush1.msra.mxu0 0.0
        %1291 = vmatprep.subr.mxu0 0.0
        %1292 = vmatpush1.msra.mxu0 0.0
        %1293 = vmatprep.subr.mxu0 0.0
        %1294 = vmatpush1.msra.mxu0 0.0
        %1295 = vmatprep.subr.mxu0 0.0
        %1296 = vmatpush1.msra.mxu0 0.0
        %1297 = vmatprep.subr.mxu0 0.0
        %1298 = vmatpush1.msra.mxu0 0.0
        %1299 = vmatprep.subr.mxu0 0.0
        %1300 = vmatpush1.msra.mxu0 0.0
        %1301 = vmatprep.subr.mxu0 0.0
        %1302 = vmatpush1.msra.mxu0 0.0
        %1303 = vmatprep.subr.mxu0 0.0
        %1304 = vmatpush1.msra.mxu0 0.0
        %1305 = vmatprep.subr.mxu0 0.0
        %1306 = vmatpush1.msra.mxu0 0.0
        %1307 = vmatprep.subr.mxu0 0.0
        %1308 = vmatpush1.msra.mxu0 0.0
        %1309 = vmatprep.subr.mxu0 0.0
        %1310 = vmatpush1.msra.mxu0 0.0
        %1311 = vmatprep.subr.mxu0 0.0
        %1312 = vmatpush1.msra.mxu0 0.0
        %1313 = vmatprep.subr.mxu0 0.0
        %1314 = vmatpush1.msra.mxu0 0.0
        %1315 = vmatprep.subr.mxu0 0.0
        %1316 = vmatpush1.msra.mxu0 0.0
        %1317 = vmatprep.subr.mxu0 0.0
        %1318 = vmatpush1.msra.mxu0 0.0
        %1319 = vmatprep.subr.mxu0 0.0
        %1320 = vmatpush1.msra.mxu0 0.0
        %1321 = vmatprep.subr.mxu0 0.0
        %1322 = vmatpush1.msra.mxu0 0.0
        %1323 = vmatprep.subr.mxu0 0.0
        %1324 = vmatpush1.msra.mxu0 0.0
        %1325 = vmatprep.subr.mxu0 0.0
        %1326 = vmatpush1.msra.mxu0 0.0
        %1327 = vmatprep.subr.mxu0 0.0
        %1328 = vmatpush1.msra.mxu0 0.0
        %1329 = vmatprep.subr.mxu0 0.0
        %1330 = vmatpush1.msra.mxu0 0.0
        %1331 = vmatprep.mubr.f32.mxu0 0.0
        %1332 = vmatmul.mubr.f32.gmra.mrb[0].mxu0 %v1265
        %v1333 = vpop.f32.mrb[0].mxu0
        %v1334 = vadd.f32 0.0, %v1333
        %v1335 = vpop.f32.mrb[0].mxu0
        %1336 = vdwg.mxu0
        %1337 = vrot.lane.b32.xlu0 %v327, 104
        %v1338 = vpop.permute.xlu0 %1337
        %1339 = vrot.lane.b32.xlu0 %v327, 72
        %v1340 = vpop.permute.xlu0 %1339
        %v1341 = vsel %vm343, %v1338, 0
        %v1343 = vsel %vm343, %v1340, 0
        %1345 = vmatprep.subr.mxu0 0.0
        %1346 = vmatpush1.xpose.msra.mxu0 %v1343
        %1347 = vmatprep.subr.mxu0 0.0
        %1348 = vmatpush1.xpose.msra.mxu0 0.0
        %1349 = vmatprep.subr.mxu0 0.0
        %1350 = vmatpush1.xpose.msra.mxu0 0.0
        %1351 = vmatprep.subr.mxu0 0.0
        %1352 = vmatpush1.xpose.msra.mxu0 0.0
        %1353 = vmatprep.subr.mxu0 0.0
        %1354 = vmatpush1.xpose.msra.mxu0 0.0
        %1355 = vmatprep.subr.mxu0 0.0
        %1356 = vmatpush1.xpose.msra.mxu0 0.0
        %1357 = vmatprep.subr.mxu0 0.0
        %1358 = vmatpush1.xpose.msra.mxu0 0.0
        %1359 = vmatprep.subr.mxu0 0.0
        %1360 = vmatpush1.xpose.msra.mxu0 0.0
        %1361 = vmatprep.subr.mxu0 0.0
        %1362 = vmatpush1.xpose.msra.mxu0 0.0
        %1363 = vmatprep.subr.mxu0 0.0
        %1364 = vmatpush1.xpose.msra.mxu0 0.0
        %1365 = vmatprep.subr.mxu0 0.0
        %1366 = vmatpush1.xpose.msra.mxu0 0.0
        %1367 = vmatprep.subr.mxu0 0.0
        %1368 = vmatpush1.xpose.msra.mxu0 0.0
        %1369 = vmatprep.subr.mxu0 0.0
        %1370 = vmatpush1.xpose.msra.mxu0 0.0
        %1371 = vmatprep.subr.mxu0 0.0
        %1372 = vmatpush1.xpose.msra.mxu0 0.0
        %1373 = vmatprep.subr.mxu0 0.0
        %1374 = vmatpush1.xpose.msra.mxu0 0.0
        %1375 = vmatprep.subr.mxu0 0.0
        %1376 = vmatpush1.xpose.msra.mxu0 0.0
        %1377 = vmatprep.subr.mxu0 0.0
        %1378 = vmatpush1.xpose.msra.mxu0 0.0
        %1379 = vmatprep.subr.mxu0 0.0
        %1380 = vmatpush1.xpose.msra.mxu0 0.0
        %1381 = vmatprep.subr.mxu0 0.0
        %1382 = vmatpush1.xpose.msra.mxu0 0.0
        %1383 = vmatprep.subr.mxu0 0.0
        %1384 = vmatpush1.xpose.msra.mxu0 0.0
        %1385 = vmatprep.subr.mxu0 0.0
        %1386 = vmatpush1.xpose.msra.mxu0 0.0
        %1387 = vmatprep.subr.mxu0 0.0
        %1388 = vmatpush1.xpose.msra.mxu0 0.0
        %1389 = vmatprep.subr.mxu0 0.0
        %1390 = vmatpush1.xpose.msra.mxu0 0.0
        %1391 = vmatprep.subr.mxu0 0.0
        %1392 = vmatpush1.xpose.msra.mxu0 0.0
        %1393 = vmatprep.subr.mxu0 0.0
        %1394 = vmatpush1.xpose.msra.mxu0 0.0
        %1395 = vmatprep.subr.mxu0 0.0
        %1396 = vmatpush1.xpose.msra.mxu0 0.0
        %1397 = vmatprep.subr.mxu0 0.0
        %1398 = vmatpush1.xpose.msra.mxu0 0.0
        %1399 = vmatprep.subr.mxu0 0.0
        %1400 = vmatpush1.xpose.msra.mxu0 0.0
        %1401 = vmatprep.subr.mxu0 0.0
        %1402 = vmatpush1.xpose.msra.mxu0 0.0
        %1403 = vmatprep.subr.mxu0 0.0
        %1404 = vmatpush1.xpose.msra.mxu0 0.0
        %1405 = vmatprep.subr.mxu0 0.0
        %1406 = vmatpush1.xpose.msra.mxu0 0.0
        %1407 = vmatprep.subr.mxu0 0.0
        %1408 = vmatpush1.xpose.msra.mxu0 0.0
        %1409 = vmatprep.mubr.f32.mxu0 0.0
        %1410 = vmatmul.mubr.f32.gmra.mrb[0].mxu0 %v1341
        %v1411 = vpop.f32.mrb[0].mxu0
        %v1412 = vadd.f32 0.0, %v1411
        %v1413 = vpop.f32.mrb[0].mxu0
        %1414 = vdwg.mxu0
        %1415 = vrot.lane.b32.xlu0 %v332, 104
        %v1416 = vpop.permute.xlu0 %1415
        %1417 = vrot.lane.b32.xlu0 %v332, 72
        %v1418 = vpop.permute.xlu0 %1417
        %v1419 = vsel %vm343, %v1416, 0
        %v1421 = vsel %vm343, %v1418, 0
        %1423 = vmatprep.subr.mxu0 0.0
        %1424 = vmatpush1.xpose.msra.mxu0 %v1421
        %1425 = vmatprep.subr.mxu0 0.0
        %1426 = vmatpush1.xpose.msra.mxu0 0.0
        %1427 = vmatprep.subr.mxu0 0.0
        %1428 = vmatpush1.xpose.msra.mxu0 0.0
        %1429 = vmatprep.subr.mxu0 0.0
        %1430 = vmatpush1.xpose.msra.mxu0 0.0
        %1431 = vmatprep.subr.mxu0 0.0
        %1432 = vmatpush1.xpose.msra.mxu0 0.0
        %1433 = vmatprep.subr.mxu0 0.0
        %1434 = vmatpush1.xpose.msra.mxu0 0.0
        %1435 = vmatprep.subr.mxu0 0.0
        %1436 = vmatpush1.xpose.msra.mxu0 0.0
        %1437 = vmatprep.subr.mxu0 0.0
        %1438 = vmatpush1.xpose.msra.mxu0 0.0
        %1439 = vmatprep.subr.mxu0 0.0
        %1440 = vmatpush1.xpose.msra.mxu0 0.0
        %1441 = vmatprep.subr.mxu0 0.0
        %1442 = vmatpush1.xpose.msra.mxu0 0.0
        %1443 = vmatprep.subr.mxu0 0.0
        %1444 = vmatpush1.xpose.msra.mxu0 0.0
        %1445 = vmatprep.subr.mxu0 0.0
        %1446 = vmatpush1.xpose.msra.mxu0 0.0
        %1447 = vmatprep.subr.mxu0 0.0
        %1448 = vmatpush1.xpose.msra.mxu0 0.0
        %1449 = vmatprep.subr.mxu0 0.0
        %1450 = vmatpush1.xpose.msra.mxu0 0.0
        %1451 = vmatprep.subr.mxu0 0.0
        %1452 = vmatpush1.xpose.msra.mxu0 0.0
        %1453 = vmatprep.subr.mxu0 0.0
        %1454 = vmatpush1.xpose.msra.mxu0 0.0
        %1455 = vmatprep.subr.mxu0 0.0
        %1456 = vmatpush1.xpose.msra.mxu0 0.0
        %1457 = vmatprep.subr.mxu0 0.0
        %1458 = vmatpush1.xpose.msra.mxu0 0.0
        %1459 = vmatprep.subr.mxu0 0.0
        %1460 = vmatpush1.xpose.msra.mxu0 0.0
        %1461 = vmatprep.subr.mxu0 0.0
        %1462 = vmatpush1.xpose.msra.mxu0 0.0
        %1463 = vmatprep.subr.mxu0 0.0
        %1464 = vmatpush1.xpose.msra.mxu0 0.0
        %1465 = vmatprep.subr.mxu0 0.0
        %1466 = vmatpush1.xpose.msra.mxu0 0.0
        %1467 = vmatprep.subr.mxu0 0.0
        %1468 = vmatpush1.xpose.msra.mxu0 0.0
        %1469 = vmatprep.subr.mxu0 0.0
        %1470 = vmatpush1.xpose.msra.mxu0 0.0
        %1471 = vmatprep.subr.mxu0 0.0
        %1472 = vmatpush1.xpose.msra.mxu0 0.0
        %1473 = vmatprep.subr.mxu0 0.0
        %1474 = vmatpush1.xpose.msra.mxu0 0.0
        %1475 = vmatprep.subr.mxu0 0.0
        %1476 = vmatpush1.xpose.msra.mxu0 0.0
        %1477 = vmatprep.subr.mxu0 0.0
        %1478 = vmatpush1.xpose.msra.mxu0 0.0
        %1479 = vmatprep.subr.mxu0 0.0
        %1480 = vmatpush1.xpose.msra.mxu0 0.0
        %1481 = vmatprep.subr.mxu0 0.0
        %1482 = vmatpush1.xpose.msra.mxu0 0.0
        %1483 = vmatprep.subr.mxu0 0.0
        %1484 = vmatpush1.xpose.msra.mxu0 0.0
        %1485 = vmatprep.subr.mxu0 0.0
        %1486 = vmatpush1.xpose.msra.mxu0 0.0
        %1487 = vmatprep.mubr.f32.mxu0 0.0
        %1488 = vmatmul.mubr.f32.gmra.mrb[0].mxu0 %v1419
        %v1489 = vpop.f32.mrb[0].mxu0
        %v1490 = vadd.f32 0.0, %v1489
        %v1491 = vpop.f32.mrb[0].mxu0
        %1492 = vdwg.mxu0
        %v1493 = vsel %vm496, %v1412, -1e+30
        %v1494 = vsel %vm496, %v1490, -1e+30
        %v1495 = vsel %vm343, %v1493, -inf
        %1496 = vmax.xlane.f32.xlu0 %v1495
        %v1497 = vpop.xlane.xlu0 %1496
        %v1498 = vsel %vm343, %v1494, -inf
        %1499 = vmax.xlane.f32.xlu0 %v1498
        %v1500 = vpop.xlane.xlu0 %1499
        %v1501 = vsub.f32 %v1493, %v1497
        %v1502 = vsub.f32 %v1494, %v1500
        %v1503 = vmul.f32 %v1501, 1.442695
        %v1504 = vpow.pop %v1503
        %v1505 = vmul.f32 %v1502, 1.442695
        %v1506 = vpow.pop %v1505
        %v1507 = vsel %vm343, %v1504, 0.0
        %1508 = vadd.xlane.f32.xlu0 %v1507
        %v1509 = vpop.xlane.xlu0 %1508
        %v1510 = vsel %vm343, %v1506, 0.0
        %1511 = vadd.xlane.f32.xlu0 %v1510
        %v1512 = vpop.xlane.xlu0 %1511
        %v1513 = vrcp.pop %v1509
        %v1514 = vrcp.pop %v1512
        %v1515 = vmul.f32 %v1504, %v1513
        %v1516 = vmul.f32 %v1506, %v1514
        %1517 = vrot.lane.b32.xlu0 %v327, 40
        %v1518 = vpop.permute.xlu0 %1517
        %v1521 = vsel %vm343, %v1515, 0
        %1523 = vmatprep.subr.mxu0 0.0
        %1524 = vmatpush1.msra.mxu0 %v1518
        %1525 = vmatprep.subr.mxu0 0.0
        %1526 = vmatpush1.msra.mxu0 0.0
        %1527 = vmatprep.subr.mxu0 0.0
        %1528 = vmatpush1.msra.mxu0 0.0
        %1529 = vmatprep.subr.mxu0 0.0
        %1530 = vmatpush1.msra.mxu0 0.0
        %1531 = vmatprep.subr.mxu0 0.0
        %1532 = vmatpush1.msra.mxu0 0.0
        %1533 = vmatprep.subr.mxu0 0.0
        %1534 = vmatpush1.msra.mxu0 0.0
        %1535 = vmatprep.subr.mxu0 0.0
        %1536 = vmatpush1.msra.mxu0 0.0
        %1537 = vmatprep.subr.mxu0 0.0
        %1538 = vmatpush1.msra.mxu0 0.0
        %1539 = vmatprep.subr.mxu0 0.0
        %1540 = vmatpush1.msra.mxu0 0.0
        %1541 = vmatprep.subr.mxu0 0.0
        %1542 = vmatpush1.msra.mxu0 0.0
        %1543 = vmatprep.subr.mxu0 0.0
        %1544 = vmatpush1.msra.mxu0 0.0
        %1545 = vmatprep.subr.mxu0 0.0
        %1546 = vmatpush1.msra.mxu0 0.0
        %1547 = vmatprep.subr.mxu0 0.0
        %1548 = vmatpush1.msra.mxu0 0.0
        %1549 = vmatprep.subr.mxu0 0.0
        %1550 = vmatpush1.msra.mxu0 0.0
        %1551 = vmatprep.subr.mxu0 0.0
        %1552 = vmatpush1.msra.mxu0 0.0
        %1553 = vmatprep.subr.mxu0 0.0
        %1554 = vmatpush1.msra.mxu0 0.0
        %1555 = vmatprep.subr.mxu0 0.0
        %1556 = vmatpush1.msra.mxu0 0.0
        %1557 = vmatprep.subr.mxu0 0.0
        %1558 = vmatpush1.msra.mxu0 0.0
        %1559 = vmatprep.subr.mxu0 0.0
        %1560 = vmatpush1.msra.mxu0 0.0
        %1561 = vmatprep.subr.mxu0 0.0
        %1562 = vmatpush1.msra.mxu0 0.0
        %1563 = vmatprep.subr.mxu0 0.0
        %1564 = vmatpush1.msra.mxu0 0.0
        %1565 = vmatprep.subr.mxu0 0.0
        %1566 = vmatpush1.msra.mxu0 0.0
        %1567 = vmatprep.subr.mxu0 0.0
        %1568 = vmatpush1.msra.mxu0 0.0
        %1569 = vmatprep.subr.mxu0 0.0
        %1570 = vmatpush1.msra.mxu0 0.0
        %1571 = vmatprep.subr.mxu0 0.0
        %1572 = vmatpush1.msra.mxu0 0.0
        %1573 = vmatprep.subr.mxu0 0.0
        %1574 = vmatpush1.msra.mxu0 0.0
        %1575 = vmatprep.subr.mxu0 0.0
        %1576 = vmatpush1.msra.mxu0 0.0
        %1577 = vmatprep.subr.mxu0 0.0
        %1578 = vmatpush1.msra.mxu0 0.0
        %1579 = vmatprep.subr.mxu0 0.0
        %1580 = vmatpush1.msra.mxu0 0.0
        %1581 = vmatprep.subr.mxu0 0.0
        %1582 = vmatpush1.msra.mxu0 0.0
        %1583 = vmatprep.subr.mxu0 0.0
        %1584 = vmatpush1.msra.mxu0 0.0
        %1585 = vmatprep.subr.mxu0 0.0
        %1586 = vmatpush1.msra.mxu0 0.0
        %1587 = vmatprep.mubr.f32.mxu0 0.0
        %1588 = vmatmul.mubr.f32.gmra.mrb[0].mxu0 %v1521
        %v1589 = vpop.f32.mrb[0].mxu0
        %v1590 = vadd.f32 0.0, %v1589
        %v1591 = vpop.f32.mrb[0].mxu0
        %1592 = vdwg.mxu0
        %1593 = vrot.lane.b32.xlu0 %v332, 40
        %v1594 = vpop.permute.xlu0 %1593
        %v1597 = vsel %vm343, %v1516, 0
        %1599 = vmatprep.subr.mxu0 0.0
        %1600 = vmatpush1.msra.mxu0 %v1594
        %1601 = vmatprep.subr.mxu0 0.0
        %1602 = vmatpush1.msra.mxu0 0.0
        %1603 = vmatprep.subr.mxu0 0.0
        %1604 = vmatpush1.msra.mxu0 0.0
        %1605 = vmatprep.subr.mxu0 0.0
        %1606 = vmatpush1.msra.mxu0 0.0
        %1607 = vmatprep.subr.mxu0 0.0
        %1608 = vmatpush1.msra.mxu0 0.0
        %1609 = vmatprep.subr.mxu0 0.0
        %1610 = vmatpush1.msra.mxu0 0.0
        %1611 = vmatprep.subr.mxu0 0.0
        %1612 = vmatpush1.msra.mxu0 0.0
        %1613 = vmatprep.subr.mxu0 0.0
        %1614 = vmatpush1.msra.mxu0 0.0
        %1615 = vmatprep.subr.mxu0 0.0
        %1616 = vmatpush1.msra.mxu0 0.0
        %1617 = vmatprep.subr.mxu0 0.0
        %1618 = vmatpush1.msra.mxu0 0.0
        %1619 = vmatprep.subr.mxu0 0.0
        %1620 = vmatpush1.msra.mxu0 0.0
        %1621 = vmatprep.subr.mxu0 0.0
        %1622 = vmatpush1.msra.mxu0 0.0
        %1623 = vmatprep.subr.mxu0 0.0
        %1624 = vmatpush1.msra.mxu0 0.0
        %1625 = vmatprep.subr.mxu0 0.0
        %1626 = vmatpush1.msra.mxu0 0.0
        %1627 = vmatprep.subr.mxu0 0.0
        %1628 = vmatpush1.msra.mxu0 0.0
        %1629 = vmatprep.subr.mxu0 0.0
        %1630 = vmatpush1.msra.mxu0 0.0
        %1631 = vmatprep.subr.mxu0 0.0
        %1632 = vmatpush1.msra.mxu0 0.0
        %1633 = vmatprep.subr.mxu0 0.0
        %1634 = vmatpush1.msra.mxu0 0.0
        %1635 = vmatprep.subr.mxu0 0.0
        %1636 = vmatpush1.msra.mxu0 0.0
        %1637 = vmatprep.subr.mxu0 0.0
        %1638 = vmatpush1.msra.mxu0 0.0
        %1639 = vmatprep.subr.mxu0 0.0
        %1640 = vmatpush1.msra.mxu0 0.0
        %1641 = vmatprep.subr.mxu0 0.0
        %1642 = vmatpush1.msra.mxu0 0.0
        %1643 = vmatprep.subr.mxu0 0.0
        %1644 = vmatpush1.msra.mxu0 0.0
        %1645 = vmatprep.subr.mxu0 0.0
        %1646 = vmatpush1.msra.mxu0 0.0
        %1647 = vmatprep.subr.mxu0 0.0
        %1648 = vmatpush1.msra.mxu0 0.0
        %1649 = vmatprep.subr.mxu0 0.0
        %1650 = vmatpush1.msra.mxu0 0.0
        %1651 = vmatprep.subr.mxu0 0.0
        %1652 = vmatpush1.msra.mxu0 0.0
        %1653 = vmatprep.subr.mxu0 0.0
        %1654 = vmatpush1.msra.mxu0 0.0
        %1655 = vmatprep.subr.mxu0 0.0
        %1656 = vmatpush1.msra.mxu0 0.0
        %1657 = vmatprep.subr.mxu0 0.0
        %1658 = vmatpush1.msra.mxu0 0.0
        %1659 = vmatprep.subr.mxu0 0.0
        %1660 = vmatpush1.msra.mxu0 0.0
        %1661 = vmatprep.subr.mxu0 0.0
        %1662 = vmatpush1.msra.mxu0 0.0
        %1663 = vmatprep.mubr.f32.mxu0 0.0
        %1664 = vmatmul.mubr.f32.gmra.mrb[0].mxu0 %v1597
        %v1665 = vpop.f32.mrb[0].mxu0
        %v1666 = vadd.f32 0.0, %v1665
        %v1667 = vpop.f32.mrb[0].mxu0
        %1668 = vdwg.mxu0
        %1671 = vrot.lane.b32.xlu0 %v926, 8
        %v1672 = vpop.permute.xlu0 %1671
        %1673 = vrot.lane.b32.xlu0 %v1002, 8
        %v1674 = vpop.permute.xlu0 %1673
        %1679 = vrot.lane.b32.xlu0 %v1258, 16
        %v1680 = vpop.permute.xlu0 %1679
        %1681 = vrot.lane.b32.xlu0 %v1334, 16
        %v1682 = vpop.permute.xlu0 %1681
        %1687 = vrot.lane.b32.xlu0 %v1590, 24
        %v1688 = vpop.permute.xlu0 %1687
        %1689 = vrot.lane.b32.xlu0 %v1666, 24
        %v1690 = vpop.permute.xlu0 %1689
        %v1693 = vsel %vm343, %v594, %v1672
        %v1694 = vsel %vm343, %v670, %v1674
        %vm1695 = vcmask 130048
        %v1696 = vsel %vm1695, %v1693, %v1680
        %v1697 = vsel %vm1695, %v1694, %v1682
        %vm1698 = vcmask 195584
        %v1699 = vsel %vm1698, %v1696, %v1688
        %v1700 = vsel %vm1698, %v1697, %v1690
        %v1701 = vld [vmem:[#allocation7] sm:$0xff]
        %v1702 = vld [vmem:[#allocation7 + $0x8] sm:$0xff]
        %v1703 = vld [vmem:[#allocation7 + $0x10] sm:$0xff]
        %v1704 = vld [vmem:[#allocation7 + $0x18] sm:$0xff]
        %v1705 = vld [vmem:[%s3] sm:$0x1]
        %v1707 = vlaneseq
        %v1708 = vshrl.u32 %v1707, 7
        %v1709 = vsub.s32 0, %v1708
        %v1710 = vrot.slane %v1705, %v1709
        %v1713 = vsel %vm253, %v1699, 0
        %v1716 = vsel %vm253, %v1700, 0
        %1718 = vmatprep.subr.mxu0 0.0
        %1719 = vmatpush1.msra.mxu0 %v1701
        %1720 = vmatprep.subr.mxu0 0.0
        %1721 = vmatpush1.msra.mxu0 %v1702
        %1722 = vmatprep.subr.mxu0 0.0
        %1723 = vmatpush1.msra.mxu0 %v1703
        %1724 = vmatprep.subr.mxu0 0.0
        %1725 = vmatpush1.msra.mxu0 %v1704
        %1726 = vmatprep.subr.mxu0 0.0
        %1727 = vmatpush1.msra.mxu0 0.0
        %1728 = vmatprep.subr.mxu0 0.0
        %1729 = vmatpush1.msra.mxu0 0.0
        %1730 = vmatprep.subr.mxu0 0.0
        %1731 = vmatpush1.msra.mxu0 0.0
        %1732 = vmatprep.subr.mxu0 0.0
        %1733 = vmatpush1.msra.mxu0 0.0
        %1734 = vmatprep.subr.mxu0 0.0
        %1735 = vmatpush1.msra.mxu0 0.0
        %1736 = vmatprep.subr.mxu0 0.0
        %1737 = vmatpush1.msra.mxu0 0.0
        %1738 = vmatprep.subr.mxu0 0.0
        %1739 = vmatpush1.msra.mxu0 0.0
        %1740 = vmatprep.subr.mxu0 0.0
        %1741 = vmatpush1.msra.mxu0 0.0
        %1742 = vmatprep.subr.mxu0 0.0
        %1743 = vmatpush1.msra.mxu0 0.0
        %1744 = vmatprep.subr.mxu0 0.0
        %1745 = vmatpush1.msra.mxu0 0.0
        %1746 = vmatprep.subr.mxu0 0.0
        %1747 = vmatpush1.msra.mxu0 0.0
        %1748 = vmatprep.subr.mxu0 0.0
        %1749 = vmatpush1.msra.mxu0 0.0
        %1750 = vmatprep.subr.mxu0 0.0
        %1751 = vmatpush1.msra.mxu0 0.0
        %1752 = vmatprep.subr.mxu0 0.0
        %1753 = vmatpush1.msra.mxu0 0.0
        %1754 = vmatprep.subr.mxu0 0.0
        %1755 = vmatpush1.msra.mxu0 0.0
        %1756 = vmatprep.subr.mxu0 0.0
        %1757 = vmatpush1.msra.mxu0 0.0
        %1758 = vmatprep.subr.mxu0 0.0
        %1759 = vmatpush1.msra.mxu0 0.0
        %1760 = vmatprep.subr.mxu0 0.0
        %1761 = vmatpush1.msra.mxu0 0.0
        %1762 = vmatprep.subr.mxu0 0.0
        %1763 = vmatpush1.msra.mxu0 0.0
        %1764 = vmatprep.subr.mxu0 0.0
        %1765 = vmatpush1.msra.mxu0 0.0
        %1766 = vmatprep.subr.mxu0 0.0
        %1767 = vmatpush1.msra.mxu0 0.0
        %1768 = vmatprep.subr.mxu0 0.0
        %1769 = vmatpush1.msra.mxu0 0.0
        %1770 = vmatprep.subr.mxu0 0.0
        %1771 = vmatpush1.msra.mxu0 0.0
        %1772 = vmatprep.subr.mxu0 0.0
        %1773 = vmatpush1.msra.mxu0 0.0
        %1774 = vmatprep.subr.mxu0 0.0
        %1775 = vmatpush1.msra.mxu0 0.0
        %1776 = vmatprep.subr.mxu0 0.0
        %1777 = vmatpush1.msra.mxu0 0.0
        %1778 = vmatprep.subr.mxu0 0.0
        %1779 = vmatpush1.msra.mxu0 0.0
        %1780 = vmatprep.subr.mxu0 0.0
        %1781 = vmatpush1.msra.mxu0 0.0
        %1782 = vmatprep.mubr.f32.mxu0 0.0
        %1783 = vmatmul.mubr.f32.gmra.mrb[0].mxu0 %v1713
        %v1784 = vpop.f32.mrb[0].mxu0
        %v1785 = vadd.f32 %v1710, %v1784
        %v1786 = vpop.f32.mrb[0].mxu0
        %1787 = vmatprep.mubr.f32.mxu0 0.0
        %1788 = vmatmul.mubr.f32.gmra.mrb[0].mxu0 %v1716
        %v1789 = vpop.f32.mrb[0].mxu0
        %v1790 = vadd.f32 %v1710, %v1789
        %v1791 = vpop.f32.mrb[0].mxu0
        %1792 = vdwg.mxu0
        %1793 = vst.msk [vmem:[%s244] sm:$0xff] %vm253, %v1785
        %1794 = vst.msk [vmem:[%s244 + $0x8] sm:$0xff] %vm253, %v1790
        %s1795 = sand.u32 %s119, 1
        %s1796 = scalar_lea.sflag [#allocation4], %s1795
        %s1797 = sand.u32 %s119, 1
        %s1798 = smul.addr %s1797, 16
        %s1799 = scalar_lea.vmem [#allocation8], %s1798
        // Predicated region
        $region49: #{tpu_custom_call.1} parent=35 // pred_check
          %p1800 = pneg %p129
        $region50: #{tpu_custom_call.1} parent=35 // pred_check_branch
          %1802 = sbr.rel (%p1800) target = $region52
        $region51: #{tpu_custom_call.1} parent=35 // pred_region
          %s1803 = smul.u32 2, %s22
          %s1805 = ssub.s32 256, 256
          %1806 = vsyncadd %s1796, %s1805
          %s1807 = smul.addr %s1803, 128
          %s1808 = scalar_lea.hbm %s4, %s1807
          %s1809 = sshll.u32 %s1799, 4
          %s1810 = int_to_ptr.vmem [resolvable:$true] %s1809
          %1815 = dma.vmem_to_hbm [thread:$0]  %s1810, 256, %s1808, %s1796, 128, 128, 8
        $region52: #{tpu_custom_call.1} parent=35 // pred_fallthru
          _
      $region36: #{tpu_custom_call.1} parent=5 // pred_fallthru
        _
      %p1816 = scmp.le.s32.totalorder 2, %s17
      // Predicated region
      $region53: #{tpu_custom_call.1} parent=5 // pred_check
        %p1817 = pneg %p1816
      $region54: #{tpu_custom_call.1} parent=5 // pred_check_branch
        %1819 = sbr.rel (%p1817) target = $region56
      $region55: #{tpu_custom_call.1} parent=5 // pred_region
        %s1820 = ssub.s32 %s17, 2
        // Predicated region
        $region57: #{tpu_custom_call.1} parent=55 // pred_check
          %p1821 = pneg %p135
        $region58: #{tpu_custom_call.1} parent=55 // pred_check_branch
          %1823 = sbr.rel (%p1821) target = $region60
        $region59: #{tpu_custom_call.1} parent=55 // pred_region
          %s1824 = sand.u32 %s120, 1
          %s1825 = scalar_lea.sflag [#allocation4], %s1824
          %s1826 = sand.u32 %s120, 1
          %s1827 = smul.addr %s1826, 16
          %s1828 = scalar_lea.vmem [#allocation8], %s1827
          %1829 = dma.done %s1825, 256
        $region60: #{tpu_custom_call.1} parent=55 // pred_fallthru
          _
      $region56: #{tpu_custom_call.1} parent=5 // pred_fallthru
        _
    $region6: #{tpu_custom_call.1} parent=1 // loop_footer
      %s21 = sadd.s32 1, %s17
    $region7: #{tpu_custom_call.1} parent=1 // loop_footer_branch
      %16 = sbr.rel target = $region3
    $region8: #{tpu_custom_call.1} parent=1 // loop_exit
      _
    %1830 = vsyncpa [#allocation3], 1
    %s1831 = scalar_lea.sflag [#allocation3], 1
    %1832 = vsyncpa %s1831, 1
    %1833 = vsyncpa [#allocation6], 1
    %1834 = vsyncpa [#allocation4], 1
    %s1835 = scalar_lea.sflag [#allocation4], 1
    %1836 = vsyncpa %s1835, 1

</llo_original>
